<compile_context>
chip_gen: v7x
topology: tpu7x:2x2x1
jax: 0.10.0
libtpu: 0.0.40
codegen_flags: <defaults>
</compile_context>

<pallas_src>
import functools

import jax
import jax.numpy as jnp
from jax.experimental import pallas as pl
from jax.experimental.pallas import tpu as pltpu

LN_EPS = 1e-5  # torch.nn.LayerNorm default


def _layer_norm(v, w, b):
    mu = jnp.mean(v, axis=-1, keepdims=True)
    var = jnp.mean((v - mu) ** 2, axis=-1, keepdims=True)
    return (v - mu) * jax.lax.rsqrt(var + LN_EPS) * w + b


def _transformer_kernel(num_heads, head_dim,
                        x_ref,
                        ln1w, ln1b, wqkv, bqkv, wo, bo,
                        ln2w, ln2b, wfc, bfc, wpr, bpr,
                        xo_ref, attn_ref):
    """All L ResidualAttentionBlocks for one batch block (TB, S, D).

    grid = (batch_blocks, layers).  xo_ref has a constant block index along the
    layer axis, so it acts as a VMEM-resident accumulator carrying x between
    layers; per-layer weights are indexed by the layer grid axis.
    """
    layer = pl.program_id(1)

    @pl.when(layer == 0)
    def _():
        xo_ref[...] = x_ref[...].astype(jnp.float32)      # x = x.to(float32)

    TB, S, D = xo_ref.shape
    M = TB * S
    x = xo_ref[...].reshape(M, D)

    # ---- ln_1 + MultiheadAttention (fused QKV, batched per-head attention) --
    h = _layer_norm(x, ln1w[0], ln1b[0]).astype(jnp.bfloat16)
    qkv = jnp.dot(h, wqkv[0], preferred_element_type=jnp.float32) + bqkv[0]
    scale = 1.0 / float(head_dim) ** 0.5
    q = (qkv[:, :D] * scale).reshape(TB, S, D)            # scale q once
    k = qkv[:, D:2 * D].reshape(TB, S, D)
    v = qkv[:, 2 * D:].reshape(TB, S, D)

    ctx_heads = []
    w_sum = jnp.zeros((TB, S, S), jnp.float32)
    for hd in range(num_heads):
        sl = slice(hd * head_dim, (hd + 1) * head_dim)
        qh = q[:, :, sl].astype(jnp.bfloat16)
        kh = k[:, :, sl].astype(jnp.bfloat16)
        vh = v[:, :, sl].astype(jnp.bfloat16)
        s = jnp.einsum('bqd,bkd->bqk', qh, kh,
                       preferred_element_type=jnp.float32)
        s = s - jnp.max(s, axis=-1, keepdims=True)
        p = jnp.exp(s)
        p = p * pl.reciprocal(jnp.sum(p, axis=-1, keepdims=True), approx=True)
        w_sum = w_sum + p
        ctx_heads.append(jnp.einsum('bqk,bkd->bqd', p.astype(jnp.bfloat16), vh,
                                    preferred_element_type=jnp.float32))
    # concat-of-heads -> single (M, D) @ (D, D) output projection
    ctx = jnp.concatenate(ctx_heads, axis=-1).reshape(M, D).astype(jnp.bfloat16)
    attn_out = jnp.dot(ctx, wo[0], preferred_element_type=jnp.float32) + bo[0]
    x = x + attn_out                                      # residual 1

    # ---- ln_2 + MLP (c_fc -> QuickGELU -> c_proj); dropout p=0 -> identity --
    h2 = _layer_norm(x, ln2w[0], ln2b[0]).astype(jnp.bfloat16)
    u = jnp.dot(h2, wfc[0], preferred_element_type=jnp.float32) + bfc[0]
    u = (u * jax.nn.sigmoid(1.702 * u)).astype(jnp.bfloat16)    # QuickGELU
    m = jnp.dot(u, wpr[0], preferred_element_type=jnp.float32) + bpr[0]
    x = x + m                                             # residual 2

    xo_ref[...] = x.reshape(TB, S, D)
    attn_ref[0] = w_sum * (1.0 / num_heads)   # need_weights=True, head-averaged


def _head_kernel(x_ref, lnw, lnb, w_ref, b_ref, out_ref):
    """ln_final + fused (mlp_head | mlp_head_area) matmul, lane-dense output."""
    y = _layer_norm(x_ref[...].astype(jnp.float32), lnw[...], lnb[...])
    out_ref[...] = (jnp.dot(y.astype(jnp.bfloat16), w_ref[...],
                            preferred_element_type=jnp.float32) + b_ref[...])


_WEIGHT_ORDER = ('ln1_w', 'ln1_b', 'wqkv', 'bqkv', 'wo', 'bo',
                 'ln2_w', 'ln2_b', 'wfc', 'bfc', 'wpr', 'bpr')


def transformer_forward(x, tparams, num_heads, tb=None):
    """Runs all residual attention blocks in a single pallas_call."""
    B, S, D = x.shape
    L = tparams['wqkv'].shape[0]
    head_dim = D // num_heads

    if tb is None:
        tb = max(1, min(B, 256 // S))      # fold batch so M = tb*S ~ 128..256
    b_pad = ((B + tb - 1) // tb) * tb
    if b_pad != B:
        x = jnp.pad(x, ((0, b_pad - B), (0, 0), (0, 0)))
    n_blocks = b_pad // tb

    weights = [tparams[n] for n in _WEIGHT_ORDER]          # all (L, r, c)
    w_specs = [pl.BlockSpec((1,) + w.shape[1:], lambda b, l: (l, 0, 0))
               for w in weights]
    x_spec = pl.BlockSpec((tb, S, D), lambda b, l: (b, 0, 0))

    kernel = functools.partial(_transformer_kernel, num_heads, head_dim)
    xo, attn = pl.pallas_call(
        kernel,
        out_shape=(jax.ShapeDtypeStruct((b_pad, S, D), jnp.float32),
                   jax.ShapeDtypeStruct((L, b_pad, S, S), jnp.float32)),
        grid_spec=pltpu.PrefetchScalarGridSpec(
            num_scalar_prefetch=0, grid=(n_blocks, L),
            in_specs=[x_spec] + w_specs,
            out_specs=[pl.BlockSpec((tb, S, D), lambda b, l: (b, 0, 0)),
                       pl.BlockSpec((1, tb, S, S), lambda b, l: (l, b, 0, 0))]),
        compiler_params=pltpu.CompilerParams(
            dimension_semantics=("parallel", "arbitrary")),
    )(x, *weights)
    return xo[:B], [attn[i, :B] for i in range(L)]


def final_head(x, prepped):
    """ln_final + mlp_head (cls) + mlp_head_area (objects), fused + lane-dense."""
    B, S, D = x.shape
    C = prepped['num_classes']
    A = prepped['num_areas']
    P = prepped['w_heads'].shape[1]

    m = B * S
    m_pad = ((m + 7) // 8) * 8
    x2d = x.reshape(m, D)
    if m_pad != m:
        x2d = jnp.pad(x2d, ((0, m_pad - m), (0, 0)))

    out = pl.pallas_call(
        _head_kernel,
        out_shape=jax.ShapeDtypeStruct((m_pad, P), jnp.float32),
        grid_spec=pltpu.PrefetchScalarGridSpec(
            num_scalar_prefetch=0, grid=(1,),
            in_specs=[pl.BlockSpec((m_pad, D), lambda i: (0, 0)),
                      pl.BlockSpec((1, D), lambda i: (0, 0)),
                      pl.BlockSpec((1, D), lambda i: (0, 0)),
                      pl.BlockSpec((D, P), lambda i: (0, 0)),
                      pl.BlockSpec((1, P), lambda i: (0, 0))],
            out_specs=pl.BlockSpec((m_pad, P), lambda i: (0, 0))),
        compiler_params=pltpu.CompilerParams(
            dimension_semantics=("arbitrary",)),
    )(x2d, prepped['ln_final_w'], prepped['ln_final_b'],
      prepped['w_heads'], prepped['b_heads'])

    out = out[:m].reshape(B, S, P)
    room = out[:, 0, :C]                    # mlp_head on cls token
    area = out[:, 1:, C:C + A]              # mlp_head_area on object tokens
    return room, area


def prepare_params(params):
    """One-time prep: stack per-layer weights, pre-transpose, cast to bf16."""
    D = params['ln_final_w'].shape[0]
    bf = jnp.bfloat16

    def stack(fn):
        return jnp.stack([fn(lp) for lp in params['layers']])

    t = {
        'ln1_w': stack(lambda lp: lp['ln1_w'].reshape(1, -1)),
        'ln1_b': stack(lambda lp: lp['ln1_b'].reshape(1, -1)),
        'wqkv':  stack(lambda lp: lp['in_proj_weight'].T.astype(bf)),  # (D,3D)
        'bqkv':  stack(lambda lp: lp['in_proj_bias'].reshape(1, -1)),
        'wo':    stack(lambda lp: lp['out_proj_w'].T.astype(bf)),       # (D,D)
        'bo':    stack(lambda lp: lp['out_proj_b'].reshape(1, -1)),
        'ln2_w': stack(lambda lp: lp['ln2_w'].reshape(1, -1)),
        'ln2_b': stack(lambda lp: lp['ln2_b'].reshape(1, -1)),
        'wfc':   stack(lambda lp: lp['c_fc_w'].T.astype(bf)),           # (D,4D)
        'bfc':   stack(lambda lp: lp['c_fc_b'].reshape(1, -1)),
        'wpr':   stack(lambda lp: lp['c_proj_w'].T.astype(bf)),         # (4D,D)
        'bpr':   stack(lambda lp: lp['c_proj_b'].reshape(1, -1)),
    }

    C = params['mlp_head_w'].shape[0]
    A = params['mlp_head_area_w'].shape[0]
    P = max(128, ((C + A + 127) // 128) * 128)          # lane-dense fused head
    w_heads = jnp.zeros((D, P), jnp.float32)
    w_heads = w_heads.at[:, :C].set(params['mlp_head_w'].T)
    w_heads = w_heads.at[:, C:C + A].set(params['mlp_head_area_w'].T)
    b_heads = jnp.zeros((1, P), jnp.float32)
    b_heads = b_heads.at[0, :C].set(params['mlp_head_b'])
    b_heads = b_heads.at[0, C:C + A].set(params['mlp_head_area_b'])

    return {
        'transformer': t,
        'ln_final_w': params['ln_final_w'].reshape(1, -1),
        'ln_final_b': params['ln_final_b'].reshape(1, -1),
        'w_heads': w_heads.astype(bf),
        'b_heads': b_heads,
        'num_classes': C,
        'num_areas': A,
        'semantic_embedding': params['semantic_embedding'],
        'cls_token': params['cls_token'],
    }


def h3dsg_forward(prepped, obj_token, num_heads):
    # nn.Embedding lookup (glue, plain JAX gather).
    semantic_embedding = prepped['semantic_embedding'][obj_token]   # (B, N, D)
    # TODO(synk): the OBB positional-embedding submodule is not defined in the
    # reference source; we follow the positional_embedding_is=False path
    # (objects = semantic_embedding).
    objects = semantic_embedding
    B, N, D = objects.shape

    cls_tokens = jnp.broadcast_to(
        prepped['cls_token'].astype(jnp.float32), (B, 1, D))
    x = jnp.concatenate([cls_tokens, objects], axis=1)              # (B, S, D)

    x, attn_matrices = transformer_forward(x, prepped['transformer'], num_heads)
    x_roomtype, x_areatype = final_head(x, prepped)
    return x_roomtype, x_areatype, attn_matrices


def init_params(key, *, vocab, width, layers, num_classes, num_areas):
    ks = jax.random.split(key, 4 + layers)

    def normal(k, shape, scale=0.02):
        return scale * jax.random.normal(k, shape, jnp.float32)

    params = {
        'semantic_embedding': normal(ks[0], (vocab, width)),
        'cls_token': normal(ks[1], (1, 1, width), scale=1.0),
        'ln_final_w': jnp.ones((width,), jnp.float32),
        'ln_final_b': jnp.zeros((width,), jnp.float32),
        'mlp_head_w': normal(ks[2], (num_classes, width)),
        'mlp_head_b': jnp.zeros((num_classes,), jnp.float32),
        'mlp_head_area_w': normal(ks[3], (num_areas, width)),
        'mlp_head_area_b': jnp.zeros((num_areas,), jnp.float32),
        'layers': [],
    }
    for i in range(layers):
        lk = jax.random.split(ks[4 + i], 4)
        params['layers'].append({
            'ln1_w': jnp.ones((width,), jnp.float32),
            'ln1_b': jnp.zeros((width,), jnp.float32),
            'in_proj_weight': normal(lk[0], (3 * width, width)),
            'in_proj_bias': jnp.zeros((3 * width,), jnp.float32),
            'out_proj_w': normal(lk[1], (width, width)),
            'out_proj_b': jnp.zeros((width,), jnp.float32),
            'ln2_w': jnp.ones((width,), jnp.float32),
            'ln2_b': jnp.zeros((width,), jnp.float32),
            'c_fc_w': normal(lk[2], (4 * width, width)),
            'c_fc_b': jnp.zeros((4 * width,), jnp.float32),
            'c_proj_w': normal(lk[3], (width, 4 * width)),
            'c_proj_b': jnp.zeros((width,), jnp.float32),
        })
    return params


if __name__ == "__main__":
    # Small shapes consistent with the module (width multiple of 64 so that
    # heads = int(width / 64) as in the reference; embed_dim == width).
    B, N = 2, 7                  # batch, num_objects  -> seq = N + 1 = 8
    WIDTH = 128                  # transformer_width
    LAYERS = 2                   # transformer_layers (small for demo)
    NUM_HEADS = WIDTH // 64      # int(transformer_width / 64) = 2
    VOCAB = 100                  # text_embedding_vocab_size (small)
    NUM_CLASSES = 10
    NUM_AREAS = 5

    key = jax.random.PRNGKey(0)
    pkey, tkey = jax.random.split(key)
    params = init_params(pkey, vocab=VOCAB, width=WIDTH, layers=LAYERS,
                         num_classes=NUM_CLASSES, num_areas=NUM_AREAS)
    prepped = prepare_params(params)          # one-time weight prep
    obj_token = jax.random.randint(tkey, (B, N), 0, VOCAB)

    room, area, attn = h3dsg_forward(prepped, obj_token, NUM_HEADS)
    jax.block_until_ready((room, area, attn))

    assert room.shape == (B, NUM_CLASSES)
    assert area.shape == (B, N, NUM_AREAS)
    assert len(attn) == LAYERS and attn[0].shape == (B, N + 1, N + 1)
    print("KERNEL_OK")
</pallas_src>

<mosaic_0001>
module attributes {stable_mosaic.version = 11 : i64} {
  func.func @_transformer_kernel(%arg0: i32, %arg1: i32, %arg2: memref<2x8x128xf32, #tpu.memory_space<vmem>>, %arg3: memref<1x1x128xf32, #tpu.memory_space<vmem>>, %arg4: memref<1x1x128xf32, #tpu.memory_space<vmem>>, %arg5: memref<1x128x384xbf16, #tpu.memory_space<vmem>>, %arg6: memref<1x1x384xf32, #tpu.memory_space<vmem>>, %arg7: memref<1x128x128xbf16, #tpu.memory_space<vmem>>, %arg8: memref<1x1x128xf32, #tpu.memory_space<vmem>>, %arg9: memref<1x1x128xf32, #tpu.memory_space<vmem>>, %arg10: memref<1x1x128xf32, #tpu.memory_space<vmem>>, %arg11: memref<1x128x512xbf16, #tpu.memory_space<vmem>>, %arg12: memref<1x1x512xf32, #tpu.memory_space<vmem>>, %arg13: memref<1x512x128xbf16, #tpu.memory_space<vmem>>, %arg14: memref<1x1x128xf32, #tpu.memory_space<vmem>>, %arg15: memref<2x8x128xf32, #tpu.memory_space<vmem>>, %arg16: memref<1x2x8x8xf32, #tpu.memory_space<vmem>>) attributes {dimension_semantics = [#tpu.dimension_semantics<parallel>, #tpu.dimension_semantics<arbitrary>], iteration_bounds = array<i64: 1, 2>, scalar_prefetch = 0 : i64, scratch_operands = 0 : i64, tpu.core_type = #tpu.core_type<tc>, window_params = [{transform_indices = @transform_0, window_bounds = array<i64: 2, 8, 128>}, {transform_indices = @transform_1, window_bounds = array<i64: 1, 1, 128>}, {transform_indices = @transform_2, window_bounds = array<i64: 1, 1, 128>}, {transform_indices = @transform_3, window_bounds = array<i64: 1, 128, 384>}, {transform_indices = @transform_4, window_bounds = array<i64: 1, 1, 384>}, {transform_indices = @transform_5, window_bounds = array<i64: 1, 128, 128>}, {transform_indices = @transform_6, window_bounds = array<i64: 1, 1, 128>}, {transform_indices = @transform_7, window_bounds = array<i64: 1, 1, 128>}, {transform_indices = @transform_8, window_bounds = array<i64: 1, 1, 128>}, {transform_indices = @transform_9, window_bounds = array<i64: 1, 128, 512>}, {transform_indices = @transform_10, window_bounds = array<i64: 1, 1, 512>}, {transform_indices = @transform_11, window_bounds = array<i64: 1, 512, 128>}, {transform_indices = @transform_12, window_bounds = array<i64: 1, 1, 128>}, {transform_indices = @transform_13, window_bounds = array<i64: 2, 8, 128>}, {transform_indices = @transform_14, window_bounds = array<i64: 1, 2, 8, 8>}]} {
    %c0_i32 = arith.constant 0 : i32
    %0 = arith.cmpi eq, %arg1, %c0_i32 : i32
    %1 = arith.extui %0 : i1 to i32
    %c0_i32_0 = arith.constant 0 : i32
    %2 = arith.cmpi ne, %1, %c0_i32_0 : i32
    scf.if %2 {
      %c0_72 = arith.constant 0 : index
      %c0_73 = arith.constant 0 : index
      %c0_74 = arith.constant 0 : index
      %157 = vector.load %arg2[%c0_72, %c0_73, %c0_74] : memref<2x8x128xf32, #tpu.memory_space<vmem>>, vector<2x8x128xf32>
      %c0_75 = arith.constant 0 : index
      %c0_76 = arith.constant 0 : index
      %c0_77 = arith.constant 0 : index
      %158 = vector.load %arg15[%c0_75, %c0_76, %c0_77] : memref<2x8x128xf32, #tpu.memory_space<vmem>>, vector<2x8x128xf32>
      tpu.vector_store %arg15[%c0_75, %c0_76, %c0_77], %157 {strides = array<i32>} : memref<2x8x128xf32, #tpu.memory_space<vmem>>, vector<2x8x128xf32>,
    } else {
    }
    %c0 = arith.constant 0 : index
    %c0_1 = arith.constant 0 : index
    %c0_2 = arith.constant 0 : index
    %3 = vector.load %arg15[%c0, %c0_1, %c0_2] : memref<2x8x128xf32, #tpu.memory_space<vmem>>, vector<2x8x128xf32>
    %4 = vector.shape_cast %3 : vector<2x8x128xf32> to vector<16x128xf32>
    %c0_3 = arith.constant 0 : index
    %c0_4 = arith.constant 0 : index
    %c0_5 = arith.constant 0 : index
    %5 = vector.load %arg3[%c0_3, %c0_4, %c0_5] : memref<1x1x128xf32, #tpu.memory_space<vmem>>, vector<1x1x128xf32>
    %6 = vector.shape_cast %5 : vector<1x1x128xf32> to vector<1x128xf32>
    %c0_6 = arith.constant 0 : index
    %c0_7 = arith.constant 0 : index
    %c0_8 = arith.constant 0 : index
    %7 = vector.load %arg4[%c0_6, %c0_7, %c0_8] : memref<1x1x128xf32, #tpu.memory_space<vmem>>, vector<1x1x128xf32>
    %8 = vector.shape_cast %7 : vector<1x1x128xf32> to vector<1x128xf32>
    %cst = arith.constant dense<0.000000e+00> : vector<16xf32>
    %9 = vector.multi_reduction <add>, %4, %cst [1] : vector<16x128xf32> to vector<16xf32>
    %10 = vector.shape_cast %9 : vector<16xf32> to vector<16x1xf32>
    %cst_9 = arith.constant 1.280000e+02 : f32
    %11 = vector.broadcast %cst_9 : f32 to vector<16x1xf32>
    %12 = arith.divf %10, %11 : vector<16x1xf32>
    %13 = vector.broadcast %12 : vector<16x1xf32> to vector<16x128xf32>
    %14 = arith.subf %4, %13 : vector<16x128xf32>
    %15 = arith.mulf %14, %14 : vector<16x128xf32>
    %cst_10 = arith.constant dense<0.000000e+00> : vector<16xf32>
    %16 = vector.multi_reduction <add>, %15, %cst_10 [1] : vector<16x128xf32> to vector<16xf32>
    %17 = vector.shape_cast %16 : vector<16xf32> to vector<16x1xf32>
    %cst_11 = arith.constant 1.280000e+02 : f32
    %18 = vector.broadcast %cst_11 : f32 to vector<16x1xf32>
    %19 = arith.divf %17, %18 : vector<16x1xf32>
    %20 = vector.broadcast %12 : vector<16x1xf32> to vector<16x128xf32>
    %21 = arith.subf %4, %20 : vector<16x128xf32>
    %cst_12 = arith.constant 9.99999974E-6 : f32
    %22 = vector.broadcast %cst_12 : f32 to vector<16x1xf32>
    %23 = arith.addf %19, %22 : vector<16x1xf32>
    %24 = math.rsqrt %23 : vector<16x1xf32>
    %25 = vector.broadcast %24 : vector<16x1xf32> to vector<16x128xf32>
    %26 = arith.mulf %21, %25 : vector<16x128xf32>
    %27 = vector.broadcast %6 : vector<1x128xf32> to vector<16x128xf32>
    %28 = arith.mulf %26, %27 : vector<16x128xf32>
    %29 = vector.broadcast %8 : vector<1x128xf32> to vector<16x128xf32>
    %30 = arith.addf %28, %29 : vector<16x128xf32>
    %31 = arith.truncf %30 : vector<16x128xf32> to vector<16x128xbf16>
    %c0_13 = arith.constant 0 : index
    %c0_14 = arith.constant 0 : index
    %c0_15 = arith.constant 0 : index
    %32 = vector.load %arg5[%c0_13, %c0_14, %c0_15] : memref<1x128x384xbf16, #tpu.memory_space<vmem>>, vector<1x128x384xbf16>
    %33 = vector.shape_cast %32 : vector<1x128x384xbf16> to vector<128x384xbf16>
    %cst_16 = arith.constant dense<0.000000e+00> : vector<16x384xf32>
    %34 = tpu.matmul %31, %33, %cst_16 {dimension_numbers = #tpu.dot_dimension_numbers<[1], [0], [0], [1], [0, 0, 1, 1], [], []>} : vector<16x128xbf16>, vector<128x384xbf16>, vector<16x384xf32> -> vector<16x384xf32>
    %c0_17 = arith.constant 0 : index
    %c0_18 = arith.constant 0 : index
    %c0_19 = arith.constant 0 : index
    %35 = vector.load %arg6[%c0_17, %c0_18, %c0_19] : memref<1x1x384xf32, #tpu.memory_space<vmem>>, vector<1x1x384xf32>
    %36 = vector.shape_cast %35 : vector<1x1x384xf32> to vector<1x384xf32>
    %37 = vector.broadcast %36 : vector<1x384xf32> to vector<16x384xf32>
    %38 = arith.addf %34, %37 : vector<16x384xf32>
    %39 = vector.extract_strided_slice %38 {offsets = [0, 0], sizes = [16, 128], strides = [1, 1]} : vector<16x384xf32> to vector<16x128xf32>
    %cst_20 = arith.constant 1.250000e-01 : f32
    %40 = vector.broadcast %cst_20 : f32 to vector<16x128xf32>
    %41 = arith.mulf %39, %40 : vector<16x128xf32>
    %42 = vector.shape_cast %41 : vector<16x128xf32> to vector<2x8x128xf32>
    %43 = vector.extract_strided_slice %38 {offsets = [0, 128], sizes = [16, 128], strides = [1, 1]} : vector<16x384xf32> to vector<16x128xf32>
    %44 = vector.shape_cast %43 : vector<16x128xf32> to vector<2x8x128xf32>
    %45 = vector.extract_strided_slice %38 {offsets = [0, 256], sizes = [16, 128], strides = [1, 1]} : vector<16x384xf32> to vector<16x128xf32>
    %46 = vector.shape_cast %45 : vector<16x128xf32> to vector<2x8x128xf32>
    %cst_21 = arith.constant 0.000000e+00 : f32
    %47 = vector.broadcast %cst_21 : f32 to vector<2x8x8xf32>
    %48 = vector.extract_strided_slice %42 {offsets = [0, 0, 0], sizes = [2, 8, 64], strides = [1, 1, 1]} : vector<2x8x128xf32> to vector<2x8x64xf32>
    %49 = arith.truncf %48 : vector<2x8x64xf32> to vector<2x8x64xbf16>
    %50 = vector.extract_strided_slice %44 {offsets = [0, 0, 0], sizes = [2, 8, 64], strides = [1, 1, 1]} : vector<2x8x128xf32> to vector<2x8x64xf32>
    %51 = arith.truncf %50 : vector<2x8x64xf32> to vector<2x8x64xbf16>
    %52 = vector.extract_strided_slice %46 {offsets = [0, 0, 0], sizes = [2, 8, 64], strides = [1, 1, 1]} : vector<2x8x128xf32> to vector<2x8x64xf32>
    %53 = arith.truncf %52 : vector<2x8x64xf32> to vector<2x8x64xbf16>
    "tpu.trace_start"() <{level = 10 : i32, message = "bqd,bkd->bqk"}> : () -> ()
    %cst_22 = arith.constant dense<0.000000e+00> : vector<2x8x8xf32>
    %54 = tpu.matmul %49, %51, %cst_22 {dimension_numbers = #tpu.dot_dimension_numbers<[2], [2], [1], [1], [0, 0, 0, 1, 1, 1], [0], [0]>} : vector<2x8x64xbf16>, vector<2x8x64xbf16>, vector<2x8x8xf32> -> vector<2x8x8xf32>
    "tpu.trace_stop"() : () -> ()
    %cst_23 = arith.constant dense<0xFF800000> : vector<2x8xf32>
    %55 = vector.multi_reduction <maximumf>, %54, %cst_23 [2] : vector<2x8x8xf32> to vector<2x8xf32>
    %56 = vector.shape_cast %55 : vector<2x8xf32> to vector<2x8x1xf32>
    %57 = vector.broadcast %56 : vector<2x8x1xf32> to vector<2x8x8xf32>
    %58 = arith.subf %54, %57 : vector<2x8x8xf32>
    %59 = math.exp %58 : vector<2x8x8xf32>
    %cst_24 = arith.constant dense<0.000000e+00> : vector<2x8xf32>
    %60 = vector.multi_reduction <add>, %59, %cst_24 [2] : vector<2x8x8xf32> to vector<2x8xf32>
    %61 = vector.shape_cast %60 : vector<2x8xf32> to vector<2x8x1xf32>
    %62 = tpu.reciprocal %61 {approx = true} : vector<2x8x1xf32> -> vector<2x8x1xf32>
    %63 = vector.broadcast %62 : vector<2x8x1xf32> to vector<2x8x8xf32>
    %64 = arith.mulf %59, %63 : vector<2x8x8xf32>
    %65 = arith.addf %47, %64 : vector<2x8x8xf32>
    %66 = arith.truncf %64 : vector<2x8x8xf32> to vector<2x8x8xbf16>
    "tpu.trace_start"() <{level = 10 : i32, message = "bqk,bkd->bqd"}> : () -> ()
    %cst_25 = arith.constant dense<0.000000e+00> : vector<2x8x64xf32>
    %67 = tpu.matmul %66, %53, %cst_25 {dimension_numbers = #tpu.dot_dimension_numbers<[2], [1], [1], [2], [0, 0, 0, 1, 1, 2], [0], [0]>} : vector<2x8x8xbf16>, vector<2x8x64xbf16>, vector<2x8x64xf32> -> vector<2x8x64xf32>
    "tpu.trace_stop"() : () -> ()
    %68 = vector.extract_strided_slice %42 {offsets = [0, 0, 64], sizes = [2, 8, 64], strides = [1, 1, 1]} : vector<2x8x128xf32> to vector<2x8x64xf32>
    %69 = arith.truncf %68 : vector<2x8x64xf32> to vector<2x8x64xbf16>
    %70 = vector.extract_strided_slice %44 {offsets = [0, 0, 64], sizes = [2, 8, 64], strides = [1, 1, 1]} : vector<2x8x128xf32> to vector<2x8x64xf32>
    %71 = arith.truncf %70 : vector<2x8x64xf32> to vector<2x8x64xbf16>
    %72 = vector.extract_strided_slice %46 {offsets = [0, 0, 64], sizes = [2, 8, 64], strides = [1, 1, 1]} : vector<2x8x128xf32> to vector<2x8x64xf32>
    %73 = arith.truncf %72 : vector<2x8x64xf32> to vector<2x8x64xbf16>
    "tpu.trace_start"() <{level = 10 : i32, message = "bqd,bkd->bqk"}> : () -> ()
    %cst_26 = arith.constant dense<0.000000e+00> : vector<2x8x8xf32>
    %74 = tpu.matmul %69, %71, %cst_26 {dimension_numbers = #tpu.dot_dimension_numbers<[2], [2], [1], [1], [0, 0, 0, 1, 1, 1], [0], [0]>} : vector<2x8x64xbf16>, vector<2x8x64xbf16>, vector<2x8x8xf32> -> vector<2x8x8xf32>
    "tpu.trace_stop"() : () -> ()
    %cst_27 = arith.constant dense<0xFF800000> : vector<2x8xf32>
    %75 = vector.multi_reduction <maximumf>, %74, %cst_27 [2] : vector<2x8x8xf32> to vector<2x8xf32>
    %76 = vector.shape_cast %75 : vector<2x8xf32> to vector<2x8x1xf32>
    %77 = vector.broadcast %76 : vector<2x8x1xf32> to vector<2x8x8xf32>
    %78 = arith.subf %74, %77 : vector<2x8x8xf32>
    %79 = math.exp %78 : vector<2x8x8xf32>
    %cst_28 = arith.constant dense<0.000000e+00> : vector<2x8xf32>
    %80 = vector.multi_reduction <add>, %79, %cst_28 [2] : vector<2x8x8xf32> to vector<2x8xf32>
    %81 = vector.shape_cast %80 : vector<2x8xf32> to vector<2x8x1xf32>
    %82 = tpu.reciprocal %81 {approx = true} : vector<2x8x1xf32> -> vector<2x8x1xf32>
    %83 = vector.broadcast %82 : vector<2x8x1xf32> to vector<2x8x8xf32>
    %84 = arith.mulf %79, %83 : vector<2x8x8xf32>
    %85 = arith.addf %65, %84 : vector<2x8x8xf32>
    %86 = arith.truncf %84 : vector<2x8x8xf32> to vector<2x8x8xbf16>
    "tpu.trace_start"() <{level = 10 : i32, message = "bqk,bkd->bqd"}> : () -> ()
    %cst_29 = arith.constant dense<0.000000e+00> : vector<2x8x64xf32>
    %87 = tpu.matmul %86, %73, %cst_29 {dimension_numbers = #tpu.dot_dimension_numbers<[2], [1], [1], [2], [0, 0, 0, 1, 1, 2], [0], [0]>} : vector<2x8x8xbf16>, vector<2x8x64xbf16>, vector<2x8x64xf32> -> vector<2x8x64xf32>
    "tpu.trace_stop"() : () -> ()
    %88 = tpu.concatenate %67, %87 in 2 : vector<2x8x64xf32>, vector<2x8x64xf32> -> vector<2x8x128xf32>
    %89 = vector.shape_cast %88 : vector<2x8x128xf32> to vector<16x128xf32>
    %90 = arith.truncf %89 : vector<16x128xf32> to vector<16x128xbf16>
    %c0_30 = arith.constant 0 : index
    %c0_31 = arith.constant 0 : index
    %c0_32 = arith.constant 0 : index
    %91 = vector.load %arg7[%c0_30, %c0_31, %c0_32] : memref<1x128x128xbf16, #tpu.memory_space<vmem>>, vector<1x128x128xbf16>
    %92 = vector.shape_cast %91 : vector<1x128x128xbf16> to vector<128x128xbf16>
    %cst_33 = arith.constant dense<0.000000e+00> : vector<16x128xf32>
    %93 = tpu.matmul %90, %92, %cst_33 {dimension_numbers = #tpu.dot_dimension_numbers<[1], [0], [0], [1], [0, 0, 1, 1], [], []>} : vector<16x128xbf16>, vector<128x128xbf16>, vector<16x128xf32> -> vector<16x128xf32>
    %c0_34 = arith.constant 0 : index
    %c0_35 = arith.constant 0 : index
    %c0_36 = arith.constant 0 : index
    %94 = vector.load %arg8[%c0_34, %c0_35, %c0_36] : memref<1x1x128xf32, #tpu.memory_space<vmem>>, vector<1x1x128xf32>
    %95 = vector.shape_cast %94 : vector<1x1x128xf32> to vector<1x128xf32>
    %96 = vector.broadcast %95 : vector<1x128xf32> to vector<16x128xf32>
    %97 = arith.addf %93, %96 : vector<16x128xf32>
    %98 = arith.addf %4, %97 : vector<16x128xf32>
    %c0_37 = arith.constant 0 : index
    %c0_38 = arith.constant 0 : index
    %c0_39 = arith.constant 0 : index
    %99 = vector.load %arg9[%c0_37, %c0_38, %c0_39] : memref<1x1x128xf32, #tpu.memory_space<vmem>>, vector<1x1x128xf32>
    %100 = vector.shape_cast %99 : vector<1x1x128xf32> to vector<1x128xf32>
    %c0_40 = arith.constant 0 : index
    %c0_41 = arith.constant 0 : index
    %c0_42 = arith.constant 0 : index
    %101 = vector.load %arg10[%c0_40, %c0_41, %c0_42] : memref<1x1x128xf32, #tpu.memory_space<vmem>>, vector<1x1x128xf32>
    %102 = vector.shape_cast %101 : vector<1x1x128xf32> to vector<1x128xf32>
    %cst_43 = arith.constant dense<0.000000e+00> : vector<16xf32>
    %103 = vector.multi_reduction <add>, %98, %cst_43 [1] : vector<16x128xf32> to vector<16xf32>
    %104 = vector.shape_cast %103 : vector<16xf32> to vector<16x1xf32>
    %cst_44 = arith.constant 1.280000e+02 : f32
    %105 = vector.broadcast %cst_44 : f32 to vector<16x1xf32>
    %106 = arith.divf %104, %105 : vector<16x1xf32>
    %107 = vector.broadcast %106 : vector<16x1xf32> to vector<16x128xf32>
    %108 = arith.subf %98, %107 : vector<16x128xf32>
    %109 = arith.mulf %108, %108 : vector<16x128xf32>
    %cst_45 = arith.constant dense<0.000000e+00> : vector<16xf32>
    %110 = vector.multi_reduction <add>, %109, %cst_45 [1] : vector<16x128xf32> to vector<16xf32>
    %111 = vector.shape_cast %110 : vector<16xf32> to vector<16x1xf32>
    %cst_46 = arith.constant 1.280000e+02 : f32
    %112 = vector.broadcast %cst_46 : f32 to vector<16x1xf32>
    %113 = arith.divf %111, %112 : vector<16x1xf32>
    %114 = vector.broadcast %106 : vector<16x1xf32> to vector<16x128xf32>
    %115 = arith.subf %98, %114 : vector<16x128xf32>
    %cst_47 = arith.constant 9.99999974E-6 : f32
    %116 = vector.broadcast %cst_47 : f32 to vector<16x1xf32>
    %117 = arith.addf %113, %116 : vector<16x1xf32>
    %118 = math.rsqrt %117 : vector<16x1xf32>
    %119 = vector.broadcast %118 : vector<16x1xf32> to vector<16x128xf32>
    %120 = arith.mulf %115, %119 : vector<16x128xf32>
    %121 = vector.broadcast %100 : vector<1x128xf32> to vector<16x128xf32>
    %122 = arith.mulf %120, %121 : vector<16x128xf32>
    %123 = vector.broadcast %102 : vector<1x128xf32> to vector<16x128xf32>
    %124 = arith.addf %122, %123 : vector<16x128xf32>
    %125 = arith.truncf %124 : vector<16x128xf32> to vector<16x128xbf16>
    %c0_48 = arith.constant 0 : index
    %c0_49 = arith.constant 0 : index
    %c0_50 = arith.constant 0 : index
    %126 = vector.load %arg11[%c0_48, %c0_49, %c0_50] : memref<1x128x512xbf16, #tpu.memory_space<vmem>>, vector<1x128x512xbf16>
    %127 = vector.shape_cast %126 : vector<1x128x512xbf16> to vector<128x512xbf16>
    %cst_51 = arith.constant dense<0.000000e+00> : vector<16x512xf32>
    %128 = tpu.matmul %125, %127, %cst_51 {dimension_numbers = #tpu.dot_dimension_numbers<[1], [0], [0], [1], [0, 0, 1, 1], [], []>} : vector<16x128xbf16>, vector<128x512xbf16>, vector<16x512xf32> -> vector<16x512xf32>
    %c0_52 = arith.constant 0 : index
    %c0_53 = arith.constant 0 : index
    %c0_54 = arith.constant 0 : index
    %129 = vector.load %arg12[%c0_52, %c0_53, %c0_54] : memref<1x1x512xf32, #tpu.memory_space<vmem>>, vector<1x1x512xf32>
    %130 = vector.shape_cast %129 : vector<1x1x512xf32> to vector<1x512xf32>
    %131 = vector.broadcast %130 : vector<1x512xf32> to vector<16x512xf32>
    %132 = arith.addf %128, %131 : vector<16x512xf32>
    %cst_55 = arith.constant 1.702000e+00 : f32
    %133 = vector.broadcast %cst_55 : f32 to vector<16x512xf32>
    %134 = arith.mulf %133, %132 : vector<16x512xf32>
    %135 = arith.negf %134 : vector<16x512xf32>
    %136 = math.exp %135 : vector<16x512xf32>
    %cst_56 = arith.constant 1.000000e+00 : f32
    %137 = vector.broadcast %cst_56 : f32 to vector<16x512xf32>
    %138 = arith.addf %137, %136 : vector<16x512xf32>
    %139 = arith.divf %137, %138 : vector<16x512xf32>
    %140 = arith.mulf %132, %139 : vector<16x512xf32>
    %141 = arith.truncf %140 : vector<16x512xf32> to vector<16x512xbf16>
    %c0_57 = arith.constant 0 : index
    %c0_58 = arith.constant 0 : index
    %c0_59 = arith.constant 0 : index
    %142 = vector.load %arg13[%c0_57, %c0_58, %c0_59] : memref<1x512x128xbf16, #tpu.memory_space<vmem>>, vector<1x512x128xbf16>
    %143 = vector.shape_cast %142 : vector<1x512x128xbf16> to vector<512x128xbf16>
    %cst_60 = arith.constant dense<0.000000e+00> : vector<16x128xf32>
    %144 = tpu.matmul %141, %143, %cst_60 {dimension_numbers = #tpu.dot_dimension_numbers<[1], [0], [0], [1], [0, 0, 1, 1], [], []>} : vector<16x512xbf16>, vector<512x128xbf16>, vector<16x128xf32> -> vector<16x128xf32>
    %c0_61 = arith.constant 0 : index
    %c0_62 = arith.constant 0 : index
    %c0_63 = arith.constant 0 : index
    %145 = vector.load %arg14[%c0_61, %c0_62, %c0_63] : memref<1x1x128xf32, #tpu.memory_space<vmem>>, vector<1x1x128xf32>
    %146 = vector.shape_cast %145 : vector<1x1x128xf32> to vector<1x128xf32>
    %147 = vector.broadcast %146 : vector<1x128xf32> to vector<16x128xf32>
    %148 = arith.addf %144, %147 : vector<16x128xf32>
    %149 = arith.addf %98, %148 : vector<16x128xf32>
    %150 = vector.shape_cast %149 : vector<16x128xf32> to vector<2x8x128xf32>
    %c0_64 = arith.constant 0 : index
    %c0_65 = arith.constant 0 : index
    %c0_66 = arith.constant 0 : index
    %151 = vector.load %arg15[%c0_64, %c0_65, %c0_66] : memref<2x8x128xf32, #tpu.memory_space<vmem>>, vector<2x8x128xf32>
    tpu.vector_store %arg15[%c0_64, %c0_65, %c0_66], %150 {strides = array<i32>} : memref<2x8x128xf32, #tpu.memory_space<vmem>>, vector<2x8x128xf32>,
    %cst_67 = arith.constant 5.000000e-01 : f32
    %152 = vector.broadcast %cst_67 : f32 to vector<2x8x8xf32>
    %153 = arith.mulf %85, %152 : vector<2x8x8xf32>
    %c0_68 = arith.constant 0 : index
    %c0_69 = arith.constant 0 : index
    %c0_70 = arith.constant 0 : index
    %c0_71 = arith.constant 0 : index
    %154 = vector.load %arg16[%c0_68, %c0_69, %c0_70, %c0_71] : memref<1x2x8x8xf32, #tpu.memory_space<vmem>>, vector<1x2x8x8xf32>
    %155 = vector.shape_cast %154 : vector<1x2x8x8xf32> to vector<2x8x8xf32>
    %156 = vector.shape_cast %153 : vector<2x8x8xf32> to vector<1x2x8x8xf32>
    tpu.vector_store %arg16[%c0_68, %c0_69, %c0_70, %c0_71], %156 {strides = array<i32>} : memref<1x2x8x8xf32, #tpu.memory_space<vmem>>, vector<1x2x8x8xf32>,
    return
  }
  func.func @transform_0(%arg0: i32, %arg1: i32) -> (i32, i32, i32) {
    %c0_i32 = arith.constant 0 : i32
    %c0_i32_0 = arith.constant 0 : i32
    %c0_i32_1 = arith.constant 0 : i32
    return %arg0, %c0_i32, %c0_i32_0 : i32, i32, i32
  }
  func.func @transform_1(%arg0: i32, %arg1: i32) -> (i32, i32, i32) {
    %c0_i32 = arith.constant 0 : i32
    %c0_i32_0 = arith.constant 0 : i32
    %c0_i32_1 = arith.constant 0 : i32
    return %arg1, %c0_i32, %c0_i32_0 : i32, i32, i32
  }
  func.func @transform_2(%arg0: i32, %arg1: i32) -> (i32, i32, i32) {
    %c0_i32 = arith.constant 0 : i32
    %c0_i32_0 = arith.constant 0 : i32
    %c0_i32_1 = arith.constant 0 : i32
    return %arg1, %c0_i32, %c0_i32_0 : i32, i32, i32
  }
  func.func @transform_3(%arg0: i32, %arg1: i32) -> (i32, i32, i32) {
    %c0_i32 = arith.constant 0 : i32
    %c0_i32_0 = arith.constant 0 : i32
    %c0_i32_1 = arith.constant 0 : i32
    return %arg1, %c0_i32, %c0_i32_0 : i32, i32, i32
  }
  func.func @transform_4(%arg0: i32, %arg1: i32) -> (i32, i32, i32) {
    %c0_i32 = arith.constant 0 : i32
    %c0_i32_0 = arith.constant 0 : i32
    %c0_i32_1 = arith.constant 0 : i32
    return %arg1, %c0_i32, %c0_i32_0 : i32, i32, i32
  }
  func.func @transform_5(%arg0: i32, %arg1: i32) -> (i32, i32, i32) {
    %c0_i32 = arith.constant 0 : i32
    %c0_i32_0 = arith.constant 0 : i32
    %c0_i32_1 = arith.constant 0 : i32
    return %arg1, %c0_i32, %c0_i32_0 : i32, i32, i32
  }
  func.func @transform_6(%arg0: i32, %arg1: i32) -> (i32, i32, i32) {
    %c0_i32 = arith.constant 0 : i32
    %c0_i32_0 = arith.constant 0 : i32
    %c0_i32_1 = arith.constant 0 : i32
    return %arg1, %c0_i32, %c0_i32_0 : i32, i32, i32
  }
  func.func @transform_7(%arg0: i32, %arg1: i32) -> (i32, i32, i32) {
    %c0_i32 = arith.constant 0 : i32
    %c0_i32_0 = arith.constant 0 : i32
    %c0_i32_1 = arith.constant 0 : i32
    return %arg1, %c0_i32, %c0_i32_0 : i32, i32, i32
  }
  func.func @transform_8(%arg0: i32, %arg1: i32) -> (i32, i32, i32) {
    %c0_i32 = arith.constant 0 : i32
    %c0_i32_0 = arith.constant 0 : i32
    %c0_i32_1 = arith.constant 0 : i32
    return %arg1, %c0_i32, %c0_i32_0 : i32, i32, i32
  }
  func.func @transform_9(%arg0: i32, %arg1: i32) -> (i32, i32, i32) {
    %c0_i32 = arith.constant 0 : i32
    %c0_i32_0 = arith.constant 0 : i32
    %c0_i32_1 = arith.constant 0 : i32
    return %arg1, %c0_i32, %c0_i32_0 : i32, i32, i32
  }
  func.func @transform_10(%arg0: i32, %arg1: i32) -> (i32, i32, i32) {
    %c0_i32 = arith.constant 0 : i32
    %c0_i32_0 = arith.constant 0 : i32
    %c0_i32_1 = arith.constant 0 : i32
    return %arg1, %c0_i32, %c0_i32_0 : i32, i32, i32
  }
  func.func @transform_11(%arg0: i32, %arg1: i32) -> (i32, i32, i32) {
    %c0_i32 = arith.constant 0 : i32
    %c0_i32_0 = arith.constant 0 : i32
    %c0_i32_1 = arith.constant 0 : i32
    return %arg1, %c0_i32, %c0_i32_0 : i32, i32, i32
  }
  func.func @transform_12(%arg0: i32, %arg1: i32) -> (i32, i32, i32) {
    %c0_i32 = arith.constant 0 : i32
    %c0_i32_0 = arith.constant 0 : i32
    %c0_i32_1 = arith.constant 0 : i32
    return %arg1, %c0_i32, %c0_i32_0 : i32, i32, i32
  }
  func.func @transform_13(%arg0: i32, %arg1: i32) -> (i32, i32, i32) {
    %c0_i32 = arith.constant 0 : i32
    %c0_i32_0 = arith.constant 0 : i32
    %c0_i32_1 = arith.constant 0 : i32
    return %arg0, %c0_i32, %c0_i32_0 : i32, i32, i32
  }
  func.func @transform_14(%arg0: i32, %arg1: i32) -> (i32, i32, i32, i32) {
    %c0_i32 = arith.constant 0 : i32
    %c0_i32_0 = arith.constant 0 : i32
    %c0_i32_1 = arith.constant 0 : i32
    return %arg1, %arg0, %c0_i32, %c0_i32_0 : i32, i32, i32, i32
  }
}

</mosaic_0001>

<llo_original>
// kernel: tpu_custom_call.1
$region0: #{tpu_custom_call.1}
  #allocation0 [shape = 'u32[]', space=smem, size = 0x4, offset = 0x4, fixed_abs, tag = 'smem constant byte address 0x4 - core index']
  #allocation1 [shape = 'u32[144,128]{1,0:T(1,128)}', space=vmem, size = 0x12000, scoped, tag = 'internal scratch']
  %s0 = inlined_call_operand.hbm [shape: f32[2,8,128], index: 0, kind: input, shape index: {}]
  %s1 = inlined_call_operand.hbm [shape: f32[2,1,128], index: 1, kind: input, shape index: {}]
  %s2 = inlined_call_operand.hbm [shape: f32[2,1,128], index: 2, kind: input, shape index: {}]
  %s3 = inlined_call_operand.hbm [shape: bf16[2,128,384], index: 3, kind: input, shape index: {}]
  %s4 = inlined_call_operand.vmem [shape: f32[2,1,384], index: 4, kind: input, shape index: {}]
  %s5 = inlined_call_operand.hbm [shape: bf16[2,128,128], index: 5, kind: input, shape index: {}]
  %s6 = inlined_call_operand.vmem [shape: f32[2,1,128], index: 6, kind: input, shape index: {}]
  %s7 = inlined_call_operand.vmem [shape: f32[2,1,128], index: 7, kind: input, shape index: {}]
  %s8 = inlined_call_operand.vmem [shape: f32[2,1,128], index: 8, kind: input, shape index: {}]
  %s9 = inlined_call_operand.hbm [shape: bf16[2,128,512], index: 9, kind: input, shape index: {}]
  %s10 = inlined_call_operand.vmem [shape: f32[2,1,512], index: 10, kind: input, shape index: {}]
  %s11 = inlined_call_operand.hbm [shape: bf16[2,512,128], index: 11, kind: input, shape index: {}]
  %s12 = inlined_call_operand.vmem [shape: f32[2,1,128], index: 12, kind: input, shape index: {}]
  %s13 = inlined_call_operand.hbm [shape: f32[2,8,128], index: 13, kind: output, shape index: {0}]
  %s14 = inlined_call_operand.hbm [shape: f32[2,2,8,8], index: 14, kind: output, shape index: {1}]
  %15 = xla_tuple %s13, %s14
  %s16 = sld [smem:[#allocation0]]
  $region125: #{tpu_custom_call.1} parent=0
    _
  %s18 = ssub.s32 1, %s16
  %s19 = scalar_select 0, %s18, %s16
  $region1: #{tpu_custom_call.1} parent=0
    #allocation2 [shape = 'u8[8192]{0}', space=vmem, size = 0x2000, scoped, tag = 'input window, operand 0, single buffered']
    #allocation3 [shape = 's32[2]{0}', space=sflag, size = 0x8, scoped, tag = 'scoped memory for tpu_custom_call.1']
    #allocation4 [shape = 's32[2]{0}', space=sflag, size = 0x8, scoped, tag = 'scoped memory for tpu_custom_call.1']
    #allocation5 [shape = 'u8[1024]{0}', space=vmem, size = 0x400, scoped, tag = 'input window, operand 1']
    #allocation6 [shape = 's32[2]{0}', space=sflag, size = 0x8, scoped, tag = 'scoped memory for tpu_custom_call.1']
    #allocation7 [shape = 'u8[1024]{0}', space=vmem, size = 0x400, scoped, tag = 'input window, operand 2']
    #allocation8 [shape = 'u8[196608]{0}', space=vmem, size = 0x30000, scoped, tag = 'input window, operand 3']
    #allocation9 [shape = 's32[2]{0}', space=sflag, size = 0x8, scoped, tag = 'scoped memory for tpu_custom_call.1']
    #allocation10 [shape = 'u8[65536]{0}', space=vmem, size = 0x10000, scoped, tag = 'input window, operand 5']
    #allocation11 [shape = 'u8[262144]{0}', space=vmem, size = 0x40000, scoped, tag = 'input window, operand 9']
    #allocation12 [shape = 's32[2]{0}', space=sflag, size = 0x8, scoped, tag = 'scoped memory for tpu_custom_call.1']
    #allocation13 [shape = 'u8[262144]{0}', space=vmem, size = 0x40000, scoped, tag = 'input window, operand 11']
    #allocation14 [shape = 'u8[8192]{0}', space=vmem, size = 0x2000, scoped, tag = 'output window, operand 0, single buffered']
    #allocation15 [shape = 'u8[16384]{0}', space=vmem, size = 0x4000, scoped, tag = 'output window, operand 1']
    #allocation16 [shape = 's32[2]{0}', space=sflag, size = 0x8, scoped, tag = 'scoped memory for tpu_custom_call.1']
    %20 = vsyncpa [#allocation3], 0
    %21 = vsyncpa [#allocation6], 0
    %s22 = scalar_lea.sflag [#allocation6], 1
    %23 = vsyncpa %s22, 0
    %24 = vsyncpa [#allocation9], 0
    %s25 = scalar_lea.sflag [#allocation9], 1
    %26 = vsyncpa %s25, 0
    %27 = vsyncpa [#allocation12], 0
    %s28 = scalar_lea.sflag [#allocation12], 1
    %29 = vsyncpa %s28, 0
    %30 = vsyncpa [#allocation4], 0
    %31 = vsyncpa [#allocation16], 0
    %s32 = scalar_lea.sflag [#allocation16], 1
    %33 = vsyncpa %s32, 0
    loop: start=0, step=1, limit=4
    $region2: #{tpu_custom_call.1} parent=1 // loop_pre_header
      _
    $region3: #{tpu_custom_call.1} parent=1 // loop_header
      %s35 = sphi 0, %s39
      %p36 = scmp.ge.s32.totalorder %s35, 4
      %s42 = sphi 0, %s54
      %s43 = sphi 0, %s50
      %s44 = sphi 0, %s42
      %s45 = sphi 0, %s43
      %s46 = sphi 0, %s44
      %s47 = sphi 0, %s45
      %s57 = sphi 0, %s59
      %s60 = sphi 0, %s57
      %s61 = sphi 0, %s60
      %s77 = sphi 0, %s61
      %s83 = sphi 0, %s85
      %s86 = sphi 0, %s83
      %s87 = sphi 0, %s86
      %s103 = sphi 0, %s87
      %s109 = sphi 0, %s111
      %s112 = sphi 0, %s109
      %s113 = sphi 0, %s112
      %s129 = sphi 0, %s113
      %s135 = sphi 0, %s137
      %s138 = sphi 0, %s135
      %s139 = sphi 0, %s138
      %s155 = sphi 0, %s139
      %s161 = sphi 0, %s163
      %s164 = sphi 0, %s161
      %s165 = sphi 0, %s164
      %s181 = sphi 0, %s165
      %s187 = sphi 0, %s189
      %s190 = sphi 0, %s187
      %s191 = sphi 0, %s190
      %s207 = sphi 0, %s191
      %s213 = sphi 0, %s215
      %s216 = sphi 0, %s213
      %s217 = sphi 0, %s216
      %s233 = sphi 0, %s217
      %s239 = sphi 0, %s241
      %s242 = sphi 0, %s239
      %s243 = sphi 0, %s242
      %s259 = sphi 0, %s243
      %s265 = sphi 0, %s267
      %s268 = sphi 0, %s265
      %s269 = sphi 0, %s268
      %s285 = sphi 0, %s269
      %s291 = sphi 0, %s293
      %s294 = sphi 0, %s291
      %s295 = sphi 0, %s294
      %s311 = sphi 0, %s295
      %s317 = sphi 0, %s319
      %s320 = sphi 0, %s317
      %s321 = sphi 0, %s320
      %s337 = sphi 0, %s321
      %s343 = sphi 0, %s345
      %s346 = sphi 0, %s343
      %s347 = sphi 0, %s346
      %s363 = sphi 0, %s347
      %s369 = sphi 0, %s371
      %s372 = sphi 0, %s369
      %s373 = sphi 0, %s372
      %s389 = sphi 0, %s373
      %s395 = sphi 0, %s397
      %s398 = sphi 0, %s395
      %s399 = sphi 0, %s398
      %s415 = sphi 0, %s399
      %s423 = sphi 0, %s425
      %s426 = sphi 0, %s423
      %s427 = sphi 0, %s426
      %s443 = sphi 0, %s427
    $region4: #{tpu_custom_call.1} parent=1 // loop_header_branch
      %38 = sbr.rel (%p36) target = $region8
    $region5: #{tpu_custom_call.1} parent=1 // loop_body
      %s40 = ssub.s32 %s35, 1
      %s41 = ssub.s32 %s35, 2
      %s48 = sadd.s32 1, %s43
      %p49 = scmp.ge.s32.totalorder %s48, 2
      %s50 = scalar_select %p49, 0, %s48
      %s51 = sadd.s32 1, %s42
      %s52 = scalar_select %p49, %s51, %s42
      %p53 = scmp.ge.s32.totalorder %s52, 1
      %s54 = scalar_select %p53, 0, %s52
      %s55 = ssub.s32 %s42, %s54
      %p56 = scmp.eq.s32.totalorder %s55, 0
      %s58 = sadd.s32 %s57, 1
      %s59 = scalar_select %p56, %s57, %s58
      %p62 = pneg %p56
      %p63 = scmp.eq.s32.totalorder %s35, 1
      %p64 = por %p62, %p63
      %p65 = scmp.ne.s32.totalorder %s57, %s60
      %p66 = scmp.eq.s32.totalorder %s35, 0
      %p67 = por %p65, %p66
      %p68 = scmp.ne.s32.totalorder %s57, %s60
      %p69 = scmp.eq.s32.totalorder %s40, 1
      %p70 = por %p68, %p69
      %p71 = scmp.ne.s32.totalorder %s60, %s61
      %p72 = scmp.eq.s32.totalorder %s40, 0
      %p73 = por %p71, %p72
      %p74 = scmp.ne.s32.totalorder %s60, %s61
      %p75 = scmp.eq.s32.totalorder %s41, 1
      %p76 = por %p74, %p75
      %p78 = scmp.ne.s32.totalorder %s61, %s77
      %p79 = scmp.eq.s32.totalorder %s41, 0
      %p80 = por %p78, %p79
      %s81 = ssub.s32 %s43, %s50
      %p82 = scmp.eq.s32.totalorder %s81, 0
      %s84 = sadd.s32 %s83, 1
      %s85 = scalar_select %p82, %s83, %s84
      %p88 = pneg %p82
      %p89 = scmp.eq.s32.totalorder %s35, 1
      %p90 = por %p88, %p89
      %p91 = scmp.ne.s32.totalorder %s83, %s86
      %p92 = scmp.eq.s32.totalorder %s35, 0
      %p93 = por %p91, %p92
      %p94 = scmp.ne.s32.totalorder %s83, %s86
      %p95 = scmp.eq.s32.totalorder %s40, 1
      %p96 = por %p94, %p95
      %p97 = scmp.ne.s32.totalorder %s86, %s87
      %p98 = scmp.eq.s32.totalorder %s40, 0
      %p99 = por %p97, %p98
      %p100 = scmp.ne.s32.totalorder %s86, %s87
      %p101 = scmp.eq.s32.totalorder %s41, 1
      %p102 = por %p100, %p101
      %p104 = scmp.ne.s32.totalorder %s87, %s103
      %p105 = scmp.eq.s32.totalorder %s41, 0
      %p106 = por %p104, %p105
      %s107 = ssub.s32 %s43, %s50
      %p108 = scmp.eq.s32.totalorder %s107, 0
      %s110 = sadd.s32 %s109, 1
      %s111 = scalar_select %p108, %s109, %s110
      %p114 = pneg %p108
      %p115 = scmp.eq.s32.totalorder %s35, 1
      %p116 = por %p114, %p115
      %p117 = scmp.ne.s32.totalorder %s109, %s112
      %p118 = scmp.eq.s32.totalorder %s35, 0
      %p119 = por %p117, %p118
      %p120 = scmp.ne.s32.totalorder %s109, %s112
      %p121 = scmp.eq.s32.totalorder %s40, 1
      %p122 = por %p120, %p121
      %p123 = scmp.ne.s32.totalorder %s112, %s113
      %p124 = scmp.eq.s32.totalorder %s40, 0
      %p125 = por %p123, %p124
      %p126 = scmp.ne.s32.totalorder %s112, %s113
      %p127 = scmp.eq.s32.totalorder %s41, 1
      %p128 = por %p126, %p127
      %p130 = scmp.ne.s32.totalorder %s113, %s129
      %p131 = scmp.eq.s32.totalorder %s41, 0
      %p132 = por %p130, %p131
      %s133 = ssub.s32 %s43, %s50
      %p134 = scmp.eq.s32.totalorder %s133, 0
      %s136 = sadd.s32 %s135, 1
      %s137 = scalar_select %p134, %s135, %s136
      %p140 = pneg %p134
      %p141 = scmp.eq.s32.totalorder %s35, 1
      %p142 = por %p140, %p141
      %p143 = scmp.ne.s32.totalorder %s135, %s138
      %p144 = scmp.eq.s32.totalorder %s35, 0
      %p145 = por %p143, %p144
      %p146 = scmp.ne.s32.totalorder %s135, %s138
      %p147 = scmp.eq.s32.totalorder %s40, 1
      %p148 = por %p146, %p147
      %p149 = scmp.ne.s32.totalorder %s138, %s139
      %p150 = scmp.eq.s32.totalorder %s40, 0
      %p151 = por %p149, %p150
      %p152 = scmp.ne.s32.totalorder %s138, %s139
      %p153 = scmp.eq.s32.totalorder %s41, 1
      %p154 = por %p152, %p153
      %p156 = scmp.ne.s32.totalorder %s139, %s155
      %p157 = scmp.eq.s32.totalorder %s41, 0
      %p158 = por %p156, %p157
      %s159 = ssub.s32 %s43, %s50
      %p160 = scmp.eq.s32.totalorder %s159, 0
      %s162 = sadd.s32 %s161, 1
      %s163 = scalar_select %p160, %s161, %s162
      %p166 = pneg %p160
      %p167 = scmp.eq.s32.totalorder %s35, 1
      %p168 = por %p166, %p167
      %p169 = scmp.ne.s32.totalorder %s161, %s164
      %p170 = scmp.eq.s32.totalorder %s35, 0
      %p171 = por %p169, %p170
      %p172 = scmp.ne.s32.totalorder %s161, %s164
      %p173 = scmp.eq.s32.totalorder %s40, 1
      %p174 = por %p172, %p173
      %p175 = scmp.ne.s32.totalorder %s164, %s165
      %p176 = scmp.eq.s32.totalorder %s40, 0
      %p177 = por %p175, %p176
      %p178 = scmp.ne.s32.totalorder %s164, %s165
      %p179 = scmp.eq.s32.totalorder %s41, 1
      %p180 = por %p178, %p179
      %p182 = scmp.ne.s32.totalorder %s165, %s181
      %p183 = scmp.eq.s32.totalorder %s41, 0
      %p184 = por %p182, %p183
      %s185 = ssub.s32 %s43, %s50
      %p186 = scmp.eq.s32.totalorder %s185, 0
      %s188 = sadd.s32 %s187, 1
      %s189 = scalar_select %p186, %s187, %s188
      %p192 = pneg %p186
      %p193 = scmp.eq.s32.totalorder %s35, 1
      %p194 = por %p192, %p193
      %p195 = scmp.ne.s32.totalorder %s187, %s190
      %p196 = scmp.eq.s32.totalorder %s35, 0
      %p197 = por %p195, %p196
      %p198 = scmp.ne.s32.totalorder %s187, %s190
      %p199 = scmp.eq.s32.totalorder %s40, 1
      %p200 = por %p198, %p199
      %p201 = scmp.ne.s32.totalorder %s190, %s191
      %p202 = scmp.eq.s32.totalorder %s40, 0
      %p203 = por %p201, %p202
      %p204 = scmp.ne.s32.totalorder %s190, %s191
      %p205 = scmp.eq.s32.totalorder %s41, 1
      %p206 = por %p204, %p205
      %p208 = scmp.ne.s32.totalorder %s191, %s207
      %p209 = scmp.eq.s32.totalorder %s41, 0
      %p210 = por %p208, %p209
      %s211 = ssub.s32 %s43, %s50
      %p212 = scmp.eq.s32.totalorder %s211, 0
      %s214 = sadd.s32 %s213, 1
      %s215 = scalar_select %p212, %s213, %s214
      %p218 = pneg %p212
      %p219 = scmp.eq.s32.totalorder %s35, 1
      %p220 = por %p218, %p219
      %p221 = scmp.ne.s32.totalorder %s213, %s216
      %p222 = scmp.eq.s32.totalorder %s35, 0
      %p223 = por %p221, %p222
      %p224 = scmp.ne.s32.totalorder %s213, %s216
      %p225 = scmp.eq.s32.totalorder %s40, 1
      %p226 = por %p224, %p225
      %p227 = scmp.ne.s32.totalorder %s216, %s217
      %p228 = scmp.eq.s32.totalorder %s40, 0
      %p229 = por %p227, %p228
      %p230 = scmp.ne.s32.totalorder %s216, %s217
      %p231 = scmp.eq.s32.totalorder %s41, 1
      %p232 = por %p230, %p231
      %p234 = scmp.ne.s32.totalorder %s217, %s233
      %p235 = scmp.eq.s32.totalorder %s41, 0
      %p236 = por %p234, %p235
      %s237 = ssub.s32 %s43, %s50
      %p238 = scmp.eq.s32.totalorder %s237, 0
      %s240 = sadd.s32 %s239, 1
      %s241 = scalar_select %p238, %s239, %s240
      %p244 = pneg %p238
      %p245 = scmp.eq.s32.totalorder %s35, 1
      %p246 = por %p244, %p245
      %p247 = scmp.ne.s32.totalorder %s239, %s242
      %p248 = scmp.eq.s32.totalorder %s35, 0
      %p249 = por %p247, %p248
      %p250 = scmp.ne.s32.totalorder %s239, %s242
      %p251 = scmp.eq.s32.totalorder %s40, 1
      %p252 = por %p250, %p251
      %p253 = scmp.ne.s32.totalorder %s242, %s243
      %p254 = scmp.eq.s32.totalorder %s40, 0
      %p255 = por %p253, %p254
      %p256 = scmp.ne.s32.totalorder %s242, %s243
      %p257 = scmp.eq.s32.totalorder %s41, 1
      %p258 = por %p256, %p257
      %p260 = scmp.ne.s32.totalorder %s243, %s259
      %p261 = scmp.eq.s32.totalorder %s41, 0
      %p262 = por %p260, %p261
      %s263 = ssub.s32 %s43, %s50
      %p264 = scmp.eq.s32.totalorder %s263, 0
      %s266 = sadd.s32 %s265, 1
      %s267 = scalar_select %p264, %s265, %s266
      %p270 = pneg %p264
      %p271 = scmp.eq.s32.totalorder %s35, 1
      %p272 = por %p270, %p271
      %p273 = scmp.ne.s32.totalorder %s265, %s268
      %p274 = scmp.eq.s32.totalorder %s35, 0
      %p275 = por %p273, %p274
      %p276 = scmp.ne.s32.totalorder %s265, %s268
      %p277 = scmp.eq.s32.totalorder %s40, 1
      %p278 = por %p276, %p277
      %p279 = scmp.ne.s32.totalorder %s268, %s269
      %p280 = scmp.eq.s32.totalorder %s40, 0
      %p281 = por %p279, %p280
      %p282 = scmp.ne.s32.totalorder %s268, %s269
      %p283 = scmp.eq.s32.totalorder %s41, 1
      %p284 = por %p282, %p283
      %p286 = scmp.ne.s32.totalorder %s269, %s285
      %p287 = scmp.eq.s32.totalorder %s41, 0
      %p288 = por %p286, %p287
      %s289 = ssub.s32 %s43, %s50
      %p290 = scmp.eq.s32.totalorder %s289, 0
      %s292 = sadd.s32 %s291, 1
      %s293 = scalar_select %p290, %s291, %s292
      %p296 = pneg %p290
      %p297 = scmp.eq.s32.totalorder %s35, 1
      %p298 = por %p296, %p297
      %p299 = scmp.ne.s32.totalorder %s291, %s294
      %p300 = scmp.eq.s32.totalorder %s35, 0
      %p301 = por %p299, %p300
      %p302 = scmp.ne.s32.totalorder %s291, %s294
      %p303 = scmp.eq.s32.totalorder %s40, 1
      %p304 = por %p302, %p303
      %p305 = scmp.ne.s32.totalorder %s294, %s295
      %p306 = scmp.eq.s32.totalorder %s40, 0
      %p307 = por %p305, %p306
      %p308 = scmp.ne.s32.totalorder %s294, %s295
      %p309 = scmp.eq.s32.totalorder %s41, 1
      %p310 = por %p308, %p309
      %p312 = scmp.ne.s32.totalorder %s295, %s311
      %p313 = scmp.eq.s32.totalorder %s41, 0
      %p314 = por %p312, %p313
      %s315 = ssub.s32 %s43, %s50
      %p316 = scmp.eq.s32.totalorder %s315, 0
      %s318 = sadd.s32 %s317, 1
      %s319 = scalar_select %p316, %s317, %s318
      %p322 = pneg %p316
      %p323 = scmp.eq.s32.totalorder %s35, 1
      %p324 = por %p322, %p323
      %p325 = scmp.ne.s32.totalorder %s317, %s320
      %p326 = scmp.eq.s32.totalorder %s35, 0
      %p327 = por %p325, %p326
      %p328 = scmp.ne.s32.totalorder %s317, %s320
      %p329 = scmp.eq.s32.totalorder %s40, 1
      %p330 = por %p328, %p329
      %p331 = scmp.ne.s32.totalorder %s320, %s321
      %p332 = scmp.eq.s32.totalorder %s40, 0
      %p333 = por %p331, %p332
      %p334 = scmp.ne.s32.totalorder %s320, %s321
      %p335 = scmp.eq.s32.totalorder %s41, 1
      %p336 = por %p334, %p335
      %p338 = scmp.ne.s32.totalorder %s321, %s337
      %p339 = scmp.eq.s32.totalorder %s41, 0
      %p340 = por %p338, %p339
      %s341 = ssub.s32 %s43, %s50
      %p342 = scmp.eq.s32.totalorder %s341, 0
      %s344 = sadd.s32 %s343, 1
      %s345 = scalar_select %p342, %s343, %s344
      %p348 = pneg %p342
      %p349 = scmp.eq.s32.totalorder %s35, 1
      %p350 = por %p348, %p349
      %p351 = scmp.ne.s32.totalorder %s343, %s346
      %p352 = scmp.eq.s32.totalorder %s35, 0
      %p353 = por %p351, %p352
      %p354 = scmp.ne.s32.totalorder %s343, %s346
      %p355 = scmp.eq.s32.totalorder %s40, 1
      %p356 = por %p354, %p355
      %p357 = scmp.ne.s32.totalorder %s346, %s347
      %p358 = scmp.eq.s32.totalorder %s40, 0
      %p359 = por %p357, %p358
      %p360 = scmp.ne.s32.totalorder %s346, %s347
      %p361 = scmp.eq.s32.totalorder %s41, 1
      %p362 = por %p360, %p361
      %p364 = scmp.ne.s32.totalorder %s347, %s363
      %p365 = scmp.eq.s32.totalorder %s41, 0
      %p366 = por %p364, %p365
      %s367 = ssub.s32 %s43, %s50
      %p368 = scmp.eq.s32.totalorder %s367, 0
      %s370 = sadd.s32 %s369, 1
      %s371 = scalar_select %p368, %s369, %s370
      %p374 = pneg %p368
      %p375 = scmp.eq.s32.totalorder %s35, 1
      %p376 = por %p374, %p375
      %p377 = scmp.ne.s32.totalorder %s369, %s372
      %p378 = scmp.eq.s32.totalorder %s35, 0
      %p379 = por %p377, %p378
      %p380 = scmp.ne.s32.totalorder %s369, %s372
      %p381 = scmp.eq.s32.totalorder %s40, 1
      %p382 = por %p380, %p381
      %p383 = scmp.ne.s32.totalorder %s372, %s373
      %p384 = scmp.eq.s32.totalorder %s40, 0
      %p385 = por %p383, %p384
      %p386 = scmp.ne.s32.totalorder %s372, %s373
      %p387 = scmp.eq.s32.totalorder %s41, 1
      %p388 = por %p386, %p387
      %p390 = scmp.ne.s32.totalorder %s373, %s389
      %p391 = scmp.eq.s32.totalorder %s41, 0
      %p392 = por %p390, %p391
      %s393 = ssub.s32 %s42, %s54
      %p394 = scmp.eq.s32.totalorder %s393, 0
      %s396 = sadd.s32 %s395, 1
      %s397 = scalar_select %p394, %s395, %s396
      %p400 = pneg %p394
      %p401 = scmp.eq.s32.totalorder %s35, 1
      %p402 = por %p400, %p401
      %p403 = scmp.ne.s32.totalorder %s395, %s398
      %p404 = scmp.eq.s32.totalorder %s35, 0
      %p405 = por %p403, %p404
      %p406 = scmp.ne.s32.totalorder %s395, %s398
      %p407 = scmp.eq.s32.totalorder %s40, 1
      %p408 = por %p406, %p407
      %p409 = scmp.ne.s32.totalorder %s398, %s399
      %p410 = scmp.eq.s32.totalorder %s40, 0
      %p411 = por %p409, %p410
      %p412 = scmp.ne.s32.totalorder %s398, %s399
      %p413 = scmp.eq.s32.totalorder %s41, 1
      %p414 = por %p412, %p413
      %p416 = scmp.ne.s32.totalorder %s399, %s415
      %p417 = scmp.eq.s32.totalorder %s41, 0
      %p418 = por %p416, %p417
      %s419 = ssub.s32 %s43, %s50
      %s420 = ssub.s32 %s42, %s54
      %s421 = sor.u32 %s419, %s420
      %p422 = scmp.eq.s32.totalorder %s421, 0
      %s424 = sadd.s32 %s423, 1
      %s425 = scalar_select %p422, %s423, %s424
      %p428 = pneg %p422
      %p429 = scmp.eq.s32.totalorder %s35, 1
      %p430 = por %p428, %p429
      %p431 = scmp.ne.s32.totalorder %s423, %s426
      %p432 = scmp.eq.s32.totalorder %s35, 0
      %p433 = por %p431, %p432
      %p434 = scmp.ne.s32.totalorder %s423, %s426
      %p435 = scmp.eq.s32.totalorder %s40, 1
      %p436 = por %p434, %p435
      %p437 = scmp.ne.s32.totalorder %s426, %s427
      %p438 = scmp.eq.s32.totalorder %s40, 0
      %p439 = por %p437, %p438
      %p440 = scmp.ne.s32.totalorder %s426, %s427
      %p441 = scmp.eq.s32.totalorder %s41, 1
      %p442 = por %p440, %p441
      %p444 = scmp.ne.s32.totalorder %s427, %s443
      %p445 = scmp.eq.s32.totalorder %s41, 0
      %p446 = por %p444, %p445
      %p447 = scmp.le.s32.totalorder 1, %s35
      %p448 = scmp.lt.s32.totalorder %s35, 3
      %p449 = pnand %p447, %p448
      %p450 = pneg %p449
      // Predicated region
      $region9: #{tpu_custom_call.1} parent=5 // pred_check
        _
      $region10: #{tpu_custom_call.1} parent=5 // pred_check_branch
        %452 = sbr.rel (%p449) target = $region12
      $region11: #{tpu_custom_call.1} parent=5 // pred_region
        %s453 = ssub.s32 %s35, 1
        // Predicated region
        $region13: #{tpu_custom_call.1} parent=11 // pred_check
          %p454 = pneg %p73
        $region14: #{tpu_custom_call.1} parent=11 // pred_check_branch
          %456 = sbr.rel (%p454) target = $region16
        $region15: #{tpu_custom_call.1} parent=11 // pred_region
          %s457 = smul.u32 2, %s44
          %s459 = ssub.s32 256, 256
          %460 = vsyncadd [#allocation3], %s459
          %s461 = smul.addr %s457, 128
          %s462 = scalar_lea.hbm %s0, %s461
          %s463 = sshll.u32 [#allocation2], 4
          %s464 = int_to_ptr.vmem [resolvable:$true] %s463
          %469 = dma.hbm_to_vmem [thread:$0]  %s462, 256, %s464, [#allocation3], 128, 128, 8
        $region16: #{tpu_custom_call.1} parent=11 // pred_fallthru
          _
      $region12: #{tpu_custom_call.1} parent=5 // pred_fallthru
        _
      %p470 = scmp.lt.s32.totalorder %s35, 2
      // Predicated region
      $region17: #{tpu_custom_call.1} parent=5 // pred_check
        %p471 = pneg %p470
      $region18: #{tpu_custom_call.1} parent=5 // pred_check_branch
        %473 = sbr.rel (%p471) target = $region20
      $region19: #{tpu_custom_call.1} parent=5 // pred_region
        // Predicated region
        $region21: #{tpu_custom_call.1} parent=19 // pred_check
          %p474 = pneg %p93
        $region22: #{tpu_custom_call.1} parent=19 // pred_check_branch
          %476 = sbr.rel (%p474) target = $region24
        $region23: #{tpu_custom_call.1} parent=19 // pred_region
          %s477 = sand.u32 %s35, 1
          %s478 = scalar_lea.sflag [#allocation6], %s477
          %s479 = sand.u32 %s83, 1
          %s480 = scalar_lea.vmem [#allocation5], %s479
          %s482 = ssub.s32 16, 16
          %483 = vsyncadd %s478, %s482
          %s484 = smul.addr %s43, 16
          %s485 = scalar_lea.hbm %s1, %s484
          %s487 = sshll.u32 %s480, 4
          %s488 = int_to_ptr.vmem [resolvable:$true] %s487
          %490 = dma.hbm_to_vmem [thread:$0]  %s485, 16, %s488, %s478
        $region24: #{tpu_custom_call.1} parent=19 // pred_fallthru
          _
        // Predicated region
        $region25: #{tpu_custom_call.1} parent=19 // pred_check
          %p491 = pneg %p119
        $region26: #{tpu_custom_call.1} parent=19 // pred_check_branch
          %493 = sbr.rel (%p491) target = $region28
        $region27: #{tpu_custom_call.1} parent=19 // pred_region
          %s494 = sand.u32 %s35, 1
          %s495 = scalar_lea.sflag [#allocation6], %s494
          %s496 = sand.u32 %s109, 1
          %s497 = scalar_lea.vmem [#allocation7], %s496
          %s499 = ssub.s32 16, 16
          %500 = vsyncadd %s495, %s499
          %s501 = smul.addr %s43, 16
          %s502 = scalar_lea.hbm %s2, %s501
          %s504 = sshll.u32 %s497, 4
          %s505 = int_to_ptr.vmem [resolvable:$true] %s504
          %507 = dma.hbm_to_vmem [thread:$0]  %s502, 16, %s505, %s495
        $region28: #{tpu_custom_call.1} parent=19 // pred_fallthru
          _
        // Predicated region
        $region29: #{tpu_custom_call.1} parent=19 // pred_check
          %p508 = pneg %p145
        $region30: #{tpu_custom_call.1} parent=19 // pred_check_branch
          %510 = sbr.rel (%p508) target = $region32
        $region31: #{tpu_custom_call.1} parent=19 // pred_region
          %s511 = sand.u32 %s35, 1
          %s512 = scalar_lea.sflag [#allocation9], %s511
          %s513 = sand.u32 %s135, 1
          %s514 = smul.addr %s513, 192
          %s515 = scalar_lea.vmem [#allocation8], %s514
          %s517 = ssub.s32 3072, 3072
          %518 = vsyncadd %s512, %s517
          %s519 = smul.addr %s43, 48
          %s520 = smul.addr %s519, 64
          %s521 = scalar_lea.hbm %s3, %s520
          %s522 = sshll.u32 %s515, 4
          %s523 = int_to_ptr.vmem [resolvable:$true] %s522
          %528 = dma.hbm_to_vmem [thread:$0]  %s521, 3072, %s523, %s512, 192, 192, 12
        $region32: #{tpu_custom_call.1} parent=19 // pred_fallthru
          _
        // Predicated region
        $region33: #{tpu_custom_call.1} parent=19 // pred_check
          %p529 = pneg %p171
        $region34: #{tpu_custom_call.1} parent=19 // pred_check_branch
          %531 = sbr.rel (%p529) target = $region36
        $region35: #{tpu_custom_call.1} parent=19 // pred_region
          %p532 = scmp.lt.s32.totalorder %s43, 1
          %s533 = scalar_select %p532, %s43, 1
          %s534 = smul.addr %s533, 3
          %s535 = scalar_lea.vmem %s4, %s534
        $region36: #{tpu_custom_call.1} parent=19 // pred_fallthru
          _
        // Predicated region
        $region37: #{tpu_custom_call.1} parent=19 // pred_check
          %p536 = pneg %p197
        $region38: #{tpu_custom_call.1} parent=19 // pred_check_branch
          %538 = sbr.rel (%p536) target = $region40
        $region39: #{tpu_custom_call.1} parent=19 // pred_region
          %s539 = sand.u32 %s35, 1
          %s540 = scalar_lea.sflag [#allocation9], %s539
          %s541 = sand.u32 %s187, 1
          %s542 = smul.addr %s541, 64
          %s543 = scalar_lea.vmem [#allocation10], %s542
          %s545 = ssub.s32 1024, 1024
          %546 = vsyncadd %s540, %s545
          %s547 = smul.addr %s43, 16
          %s548 = smul.addr %s547, 64
          %s549 = scalar_lea.hbm %s5, %s548
          %s550 = sshll.u32 %s543, 4
          %s551 = int_to_ptr.vmem [resolvable:$true] %s550
          %556 = dma.hbm_to_vmem [thread:$0]  %s549, 1024, %s551, %s540, 64, 64, 4
        $region40: #{tpu_custom_call.1} parent=19 // pred_fallthru
          _
        // Predicated region
        $region41: #{tpu_custom_call.1} parent=19 // pred_check
          %p557 = pneg %p223
        $region42: #{tpu_custom_call.1} parent=19 // pred_check_branch
          %559 = sbr.rel (%p557) target = $region44
        $region43: #{tpu_custom_call.1} parent=19 // pred_region
          %p560 = scmp.lt.s32.totalorder %s43, 1
          %s561 = scalar_select %p560, %s43, 1
          %s562 = scalar_lea.vmem %s6, %s561
        $region44: #{tpu_custom_call.1} parent=19 // pred_fallthru
          _
        // Predicated region
        $region45: #{tpu_custom_call.1} parent=19 // pred_check
          %p563 = pneg %p249
        $region46: #{tpu_custom_call.1} parent=19 // pred_check_branch
          %565 = sbr.rel (%p563) target = $region48
        $region47: #{tpu_custom_call.1} parent=19 // pred_region
          %p566 = scmp.lt.s32.totalorder %s43, 1
          %s567 = scalar_select %p566, %s43, 1
          %s568 = scalar_lea.vmem %s7, %s567
        $region48: #{tpu_custom_call.1} parent=19 // pred_fallthru
          _
        // Predicated region
        $region49: #{tpu_custom_call.1} parent=19 // pred_check
          %p569 = pneg %p275
        $region50: #{tpu_custom_call.1} parent=19 // pred_check_branch
          %571 = sbr.rel (%p569) target = $region52
        $region51: #{tpu_custom_call.1} parent=19 // pred_region
          %p572 = scmp.lt.s32.totalorder %s43, 1
          %s573 = scalar_select %p572, %s43, 1
          %s574 = scalar_lea.vmem %s8, %s573
        $region52: #{tpu_custom_call.1} parent=19 // pred_fallthru
          _
        // Predicated region
        $region53: #{tpu_custom_call.1} parent=19 // pred_check
          %p575 = pneg %p301
        $region54: #{tpu_custom_call.1} parent=19 // pred_check_branch
          %577 = sbr.rel (%p575) target = $region56
        $region55: #{tpu_custom_call.1} parent=19 // pred_region
          %s578 = sand.u32 %s35, 1
          %s579 = scalar_lea.sflag [#allocation12], %s578
          %s580 = sand.u32 %s291, 1
          %s581 = smul.addr %s580, 256
          %s582 = scalar_lea.vmem [#allocation11], %s581
          %s584 = ssub.s32 4096, 4096
          %585 = vsyncadd %s579, %s584
          %s586 = smul.addr %s43, 64
          %s587 = smul.addr %s586, 64
          %s588 = scalar_lea.hbm %s9, %s587
          %s589 = sshll.u32 %s582, 4
          %s590 = int_to_ptr.vmem [resolvable:$true] %s589
          %595 = dma.hbm_to_vmem [thread:$0]  %s588, 4096, %s590, %s579, 256, 256, 16
        $region56: #{tpu_custom_call.1} parent=19 // pred_fallthru
          _
        // Predicated region
        $region57: #{tpu_custom_call.1} parent=19 // pred_check
          %p596 = pneg %p327
        $region58: #{tpu_custom_call.1} parent=19 // pred_check_branch
          %598 = sbr.rel (%p596) target = $region60
        $region59: #{tpu_custom_call.1} parent=19 // pred_region
          %p599 = scmp.lt.s32.totalorder %s43, 1
          %s600 = scalar_select %p599, %s43, 1
          %s601 = smul.addr %s600, 4
          %s602 = scalar_lea.vmem %s10, %s601
        $region60: #{tpu_custom_call.1} parent=19 // pred_fallthru
          _
        // Predicated region
        $region61: #{tpu_custom_call.1} parent=19 // pred_check
          %p603 = pneg %p353
        $region62: #{tpu_custom_call.1} parent=19 // pred_check_branch
          %605 = sbr.rel (%p603) target = $region64
        $region63: #{tpu_custom_call.1} parent=19 // pred_region
          %s606 = sand.u32 %s35, 1
          %s607 = scalar_lea.sflag [#allocation12], %s606
          %s608 = sand.u32 %s343, 1
          %s609 = smul.addr %s608, 256
          %s610 = scalar_lea.vmem [#allocation13], %s609
          %s612 = ssub.s32 4096, 4096
          %613 = vsyncadd %s607, %s612
          %s614 = smul.addr %s43, 64
          %s615 = smul.addr %s614, 64
          %s616 = scalar_lea.hbm %s11, %s615
          %s617 = sshll.u32 %s610, 4
          %s618 = int_to_ptr.vmem [resolvable:$true] %s617
          %623 = dma.hbm_to_vmem [thread:$0]  %s616, 4096, %s618, %s607, 64, 64, 4
        $region64: #{tpu_custom_call.1} parent=19 // pred_fallthru
          _
        // Predicated region
        $region65: #{tpu_custom_call.1} parent=19 // pred_check
          %p624 = pneg %p379
        $region66: #{tpu_custom_call.1} parent=19 // pred_check_branch
          %626 = sbr.rel (%p624) target = $region68
        $region67: #{tpu_custom_call.1} parent=19 // pred_region
          %p627 = scmp.lt.s32.totalorder %s43, 1
          %s628 = scalar_select %p627, %s43, 1
          %s629 = scalar_lea.vmem %s12, %s628
        $region68: #{tpu_custom_call.1} parent=19 // pred_fallthru
          _
      $region20: #{tpu_custom_call.1} parent=5 // pred_fallthru
        _
      %p630 = scmp.le.s32.totalorder 1, %s35
      %p631 = scmp.lt.s32.totalorder %s35, 3
      %p632 = pnand %p630, %p631
      %p633 = pneg %p632
      // Predicated region
      $region69: #{tpu_custom_call.1} parent=5 // pred_check
        _
      $region70: #{tpu_custom_call.1} parent=5 // pred_check_branch
        %635 = sbr.rel (%p632) target = $region72
      $region71: #{tpu_custom_call.1} parent=5 // pred_region
        %s636 = ssub.s32 %s35, 1
        // Predicated region
        $region73: #{tpu_custom_call.1} parent=71 // pred_check
          %p637 = pneg %p73
        $region74: #{tpu_custom_call.1} parent=71 // pred_check_branch
          %639 = sbr.rel (%p637) target = $region76
        $region75: #{tpu_custom_call.1} parent=71 // pred_region
          %640 = dma.done [#allocation3], 256
        $region76: #{tpu_custom_call.1} parent=71 // pred_fallthru
          _
        %s641 = sand.u32 %s40, 1
        %s642 = scalar_lea.sflag [#allocation6], %s641
        %s643 = sand.u32 %s86, 1
        %s644 = scalar_lea.vmem [#allocation5], %s643
        // Predicated region
        $region77: #{tpu_custom_call.1} parent=71 // pred_check
          %p645 = pneg %p99
        $region78: #{tpu_custom_call.1} parent=71 // pred_check_branch
          %647 = sbr.rel (%p645) target = $region80
        $region79: #{tpu_custom_call.1} parent=71 // pred_region
          %648 = dma.done %s642, 16
        $region80: #{tpu_custom_call.1} parent=71 // pred_fallthru
          _
        %s649 = sand.u32 %s40, 1
        %s650 = scalar_lea.sflag [#allocation6], %s649
        %s651 = sand.u32 %s112, 1
        %s652 = scalar_lea.vmem [#allocation7], %s651
        // Predicated region
        $region81: #{tpu_custom_call.1} parent=71 // pred_check
          %p653 = pneg %p125
        $region82: #{tpu_custom_call.1} parent=71 // pred_check_branch
          %655 = sbr.rel (%p653) target = $region84
        $region83: #{tpu_custom_call.1} parent=71 // pred_region
          %656 = dma.done %s650, 16
        $region84: #{tpu_custom_call.1} parent=71 // pred_fallthru
          _
        %s657 = sand.u32 %s40, 1
        %s658 = scalar_lea.sflag [#allocation9], %s657
        %s659 = sand.u32 %s138, 1
        %s660 = smul.addr %s659, 192
        %s661 = scalar_lea.vmem [#allocation8], %s660
        // Predicated region
        $region85: #{tpu_custom_call.1} parent=71 // pred_check
          %p662 = pneg %p151
        $region86: #{tpu_custom_call.1} parent=71 // pred_check_branch
          %664 = sbr.rel (%p662) target = $region88
        $region87: #{tpu_custom_call.1} parent=71 // pred_region
          %665 = dma.done %s658, 3072
        $region88: #{tpu_custom_call.1} parent=71 // pred_fallthru
          _
        %s666 = sand.u32 %s40, 1
        %s667 = scalar_lea.sflag [#allocation9], %s666
        %s668 = sand.u32 %s190, 1
        %s669 = smul.addr %s668, 64
        %s670 = scalar_lea.vmem [#allocation10], %s669
        // Predicated region
        $region89: #{tpu_custom_call.1} parent=71 // pred_check
          %p671 = pneg %p203
        $region90: #{tpu_custom_call.1} parent=71 // pred_check_branch
          %673 = sbr.rel (%p671) target = $region92
        $region91: #{tpu_custom_call.1} parent=71 // pred_region
          %674 = dma.done %s667, 1024
        $region92: #{tpu_custom_call.1} parent=71 // pred_fallthru
          _
        %s675 = sand.u32 %s40, 1
        %s676 = scalar_lea.sflag [#allocation12], %s675
        %s677 = sand.u32 %s294, 1
        %s678 = smul.addr %s677, 256
        %s679 = scalar_lea.vmem [#allocation11], %s678
        // Predicated region
        $region93: #{tpu_custom_call.1} parent=71 // pred_check
          %p680 = pneg %p307
        $region94: #{tpu_custom_call.1} parent=71 // pred_check_branch
          %682 = sbr.rel (%p680) target = $region96
        $region95: #{tpu_custom_call.1} parent=71 // pred_region
          %683 = dma.done %s676, 4096
        $region96: #{tpu_custom_call.1} parent=71 // pred_fallthru
          _
        %s684 = sand.u32 %s40, 1
        %s685 = scalar_lea.sflag [#allocation12], %s684
        %s686 = sand.u32 %s346, 1
        %s687 = smul.addr %s686, 256
        %s688 = scalar_lea.vmem [#allocation13], %s687
        // Predicated region
        $region97: #{tpu_custom_call.1} parent=71 // pred_check
          %p689 = pneg %p359
        $region98: #{tpu_custom_call.1} parent=71 // pred_check_branch
          %691 = sbr.rel (%p689) target = $region100
        $region99: #{tpu_custom_call.1} parent=71 // pred_region
          %692 = dma.done %s685, 4096
        $region100: #{tpu_custom_call.1} parent=71 // pred_fallthru
          _
        %p693 = pneg %p73
        %p694 = pneg %p70
        %s695 = sand.u32 %s40, 1
        %s696 = scalar_lea.sflag [#allocation6], %s695
        %s697 = sand.u32 %s86, 1
        %s698 = scalar_lea.vmem [#allocation5], %s697
        %p699 = pneg %p99
        %p700 = pneg %p96
        %s701 = sand.u32 %s40, 1
        %s702 = scalar_lea.sflag [#allocation6], %s701
        %s703 = sand.u32 %s112, 1
        %s704 = scalar_lea.vmem [#allocation7], %s703
        %p705 = pneg %p125
        %p706 = pneg %p122
        %s707 = sand.u32 %s40, 1
        %s708 = scalar_lea.sflag [#allocation9], %s707
        %s709 = sand.u32 %s138, 1
        %s710 = smul.addr %s709, 192
        %s711 = scalar_lea.vmem [#allocation8], %s710
        %p712 = pneg %p151
        %p713 = pneg %p148
        %p714 = scmp.lt.s32.totalorder %s45, 1
        %s715 = scalar_select %p714, %s45, 1
        %s716 = smul.addr %s715, 3
        %s717 = scalar_lea.vmem %s4, %s716
        %p718 = pneg %p177
        %p719 = pneg %p174
        %s720 = sand.u32 %s40, 1
        %s721 = scalar_lea.sflag [#allocation9], %s720
        %s722 = sand.u32 %s190, 1
        %s723 = smul.addr %s722, 64
        %s724 = scalar_lea.vmem [#allocation10], %s723
        %p725 = pneg %p203
        %p726 = pneg %p200
        %p727 = scmp.lt.s32.totalorder %s45, 1
        %s728 = scalar_select %p727, %s45, 1
        %s729 = scalar_lea.vmem %s6, %s728
        %p730 = pneg %p229
        %p731 = pneg %p226
        %p732 = scmp.lt.s32.totalorder %s45, 1
        %s733 = scalar_select %p732, %s45, 1
        %s734 = scalar_lea.vmem %s7, %s733
        %p735 = pneg %p255
        %p736 = pneg %p252
        %p737 = scmp.lt.s32.totalorder %s45, 1
        %s738 = scalar_select %p737, %s45, 1
        %s739 = scalar_lea.vmem %s8, %s738
        %p740 = pneg %p281
        %p741 = pneg %p278
        %s742 = sand.u32 %s40, 1
        %s743 = scalar_lea.sflag [#allocation12], %s742
        %s744 = sand.u32 %s294, 1
        %s745 = smul.addr %s744, 256
        %s746 = scalar_lea.vmem [#allocation11], %s745
        %p747 = pneg %p307
        %p748 = pneg %p304
        %p749 = scmp.lt.s32.totalorder %s45, 1
        %s750 = scalar_select %p749, %s45, 1
        %s751 = smul.addr %s750, 4
        %s752 = scalar_lea.vmem %s10, %s751
        %p753 = pneg %p333
        %p754 = pneg %p330
        %s755 = sand.u32 %s40, 1
        %s756 = scalar_lea.sflag [#allocation12], %s755
        %s757 = sand.u32 %s346, 1
        %s758 = smul.addr %s757, 256
        %s759 = scalar_lea.vmem [#allocation13], %s758
        %p760 = pneg %p359
        %p761 = pneg %p356
        %p762 = scmp.lt.s32.totalorder %s45, 1
        %s763 = scalar_select %p762, %s45, 1
        %s764 = scalar_lea.vmem %s12, %s763
        %p765 = pneg %p385
        %p766 = pneg %p382
        %p767 = pneg %p411
        %p768 = pneg %p408
        %p769 = pneg %p439
        %p770 = pneg %p436
        %s771 = sand.u32 %s426, 1
        %s772 = scalar_lea.sflag [#allocation16], %s771
        %s773 = sand.u32 %s426, 1
        %s774 = smul.addr %s773, 16
        %s775 = scalar_lea.vmem [#allocation15], %s774
        %s776 = smul.u32 2, %s44
        %p777 = scmp.lt.s32.totalorder %s45, 1
        %s778 = scalar_select %p777, %s45, 1
        %s779 = smul.addr %s778, 3
        %s780 = scalar_lea.vmem %s4, %s779
        %p781 = scmp.lt.s32.totalorder %s45, 1
        %s782 = scalar_select %p781, %s45, 1
        %s783 = scalar_lea.vmem %s6, %s782
        %p784 = scmp.lt.s32.totalorder %s45, 1
        %s785 = scalar_select %p784, %s45, 1
        %s786 = scalar_lea.vmem %s7, %s785
        %p787 = scmp.lt.s32.totalorder %s45, 1
        %s788 = scalar_select %p787, %s45, 1
        %s789 = scalar_lea.vmem %s8, %s788
        %p790 = scmp.lt.s32.totalorder %s45, 1
        %s791 = scalar_select %p790, %s45, 1
        %s792 = smul.addr %s791, 4
        %s793 = scalar_lea.vmem %s10, %s792
        %p794 = scmp.lt.s32.totalorder %s45, 1
        %s795 = scalar_select %p794, %s45, 1
        %s796 = scalar_lea.vmem %s12, %s795
        %s797 = smul.u32 2, %s44
        %s798 = smul.u32 2, %s44
        %p800 = scmp.eq.s32.totalorder %s45, 0
        // Predicated region
        $region101: #{tpu_custom_call.1} parent=71 // pred_check
          %p801 = pneg %p800
        $region102: #{tpu_custom_call.1} parent=71 // pred_check_branch
          %803 = sbr.rel (%p801) target = $region104
        $region103: #{tpu_custom_call.1} parent=71 // pred_region
          %v804 = vld [vmem:[#allocation2] sm:$0xff]
          %v805 = vld [vmem:[#allocation2 + $0x8] sm:$0xff]
          %806 = vst [vmem:[#allocation14] sm:$0xff] %v804
          %807 = vst [vmem:[#allocation14 + $0x8] sm:$0xff] %v805
        $region104: #{tpu_custom_call.1} parent=71 // pred_fallthru
          _
        %v808 = vld [vmem:[#allocation14] sm:$0xff]
        %v809 = vld [vmem:[#allocation14 + $0x8] sm:$0xff]
        %v810 = vld [vmem:[%s644] sm:$0x1]
        %v811 = vld [vmem:[%s652] sm:$0x1]
        %812 = vadd.xlane.f32.xlu0 %v808
        %v813 = vpop.xlane.xlu0 %812
        %814 = vadd.xlane.f32.xlu0 %v809
        %v815 = vpop.xlane.xlu0 %814
        %v816 = vrcp.pop 128.0
        %v817 = vmul.f32 %v813, %v816
        %v818 = vmul.f32 %v815, %v816
        %v819 = vsub.f32 %v808, %v817
        %v820 = vsub.f32 %v809, %v818
        %v821 = vmul.f32 %v819, %v819
        %v822 = vmul.f32 %v820, %v820
        %823 = vadd.xlane.f32.xlu0 %v821
        %v824 = vpop.xlane.xlu0 %823
        %825 = vadd.xlane.f32.xlu0 %v822
        %v826 = vpop.xlane.xlu0 %825
        %v827 = vmul.f32 %v824, %v816
        %v828 = vmul.f32 %v826, %v816
        %v829 = vadd.f32 %v827, 1e-05
        %v830 = vadd.f32 %v828, 1e-05
        %v831 = vrsqrt.pop %v829
        %v832 = vrsqrt.pop %v830
        %v833 = vmul.f32 %v819, %v831
        %v834 = vmul.f32 %v820, %v832
        %v836 = vlaneseq
        %v837 = vshrl.u32 %v836, 7
        %v838 = vsub.s32 0, %v837
        %v839 = vrot.slane %v810, %v838
        %v841 = vmul.f32 %v833, %v839
        %v842 = vmul.f32 %v834, %v839
        %v844 = vlaneseq
        %v845 = vshrl.u32 %v844, 7
        %v846 = vsub.s32 0, %v845
        %v847 = vrot.slane %v811, %v846
        %v849 = vadd.f32 %v841, %v847
        %v850 = vadd.f32 %v842, %v847
        %v851 = vpack.c.bf16 %v850, %v849
        %v852 = vld [vmem:[%s661] sm:$0xff]
        %v853 = vld [vmem:[%s661 + $0x8] sm:$0xf]
        %v854 = vld [vmem:[%s661 + $0xc] sm:$0xff]
        %v855 = vld [vmem:[%s661 + $0x14] sm:$0xf]
        %v856 = vld [vmem:[%s661 + $0x18] sm:$0xff]
        %v857 = vld [vmem:[%s661 + $0x20] sm:$0xf]
        %v858 = vld [vmem:[%s661 + $0x24] sm:$0xff]
        %v859 = vld [vmem:[%s661 + $0x2c] sm:$0xf]
        %v860 = vld [vmem:[%s661 + $0x30] sm:$0xff]
        %v861 = vld [vmem:[%s661 + $0x38] sm:$0xf]
        %v862 = vld [vmem:[%s661 + $0x3c] sm:$0xff]
        %v863 = vld [vmem:[%s661 + $0x44] sm:$0xf]
        %v864 = vld [vmem:[%s661 + $0x48] sm:$0xff]
        %v865 = vld [vmem:[%s661 + $0x50] sm:$0xf]
        %v866 = vld [vmem:[%s661 + $0x54] sm:$0xff]
        %v867 = vld [vmem:[%s661 + $0x5c] sm:$0xf]
        %v868 = vld [vmem:[%s661 + $0x60] sm:$0xff]
        %v869 = vld [vmem:[%s661 + $0x68] sm:$0xf]
        %v870 = vld [vmem:[%s661 + $0x6c] sm:$0xff]
        %v871 = vld [vmem:[%s661 + $0x74] sm:$0xf]
        %v872 = vld [vmem:[%s661 + $0x78] sm:$0xff]
        %v873 = vld [vmem:[%s661 + $0x80] sm:$0xf]
        %v874 = vld [vmem:[%s661 + $0x84] sm:$0xff]
        %v875 = vld [vmem:[%s661 + $0x8c] sm:$0xf]
        %v876 = vld [vmem:[%s661 + $0x90] sm:$0xff]
        %v877 = vld [vmem:[%s661 + $0x98] sm:$0xf]
        %v878 = vld [vmem:[%s661 + $0x9c] sm:$0xff]
        %v879 = vld [vmem:[%s661 + $0xa4] sm:$0xf]
        %v880 = vld [vmem:[%s661 + $0xa8] sm:$0xff]
        %v881 = vld [vmem:[%s661 + $0xb0] sm:$0xf]
        %v882 = vld [vmem:[%s661 + $0xb4] sm:$0xff]
        %v883 = vld [vmem:[%s661 + $0xbc] sm:$0xf]
        %v884 = vld [vmem:[%s780] sm:$0x7]
        %v886 = vlaneseq
        %v887 = vshrl.u32 %v886, 7
        %v888 = vsub.s32 0, %v887
        %v889 = vrot.slane %v884, %v888
        %v890 = vlaneseq
        %v891 = vshrl.u32 %v890, 7
        %v892 = vsub.s32 1, %v891
        %v893 = vrot.slane %v884, %v892
        %v894 = vlaneseq
        %v895 = vshrl.u32 %v894, 7
        %v896 = vsub.s32 2, %v895
        %v897 = vrot.slane %v884, %v896
        %v933 = vunpack.c.l.b16 %v852
        %v934 = vunpack.c.h.b16 %v852
        %v935 = vunpack.c.l.b16 %v853
        %v936 = vunpack.c.l.b16 %v854
        %v937 = vunpack.c.h.b16 %v854
        %v938 = vunpack.c.l.b16 %v855
        %v939 = vunpack.c.l.b16 %v856
        %v940 = vunpack.c.h.b16 %v856
        %v941 = vunpack.c.l.b16 %v857
        %v942 = vunpack.c.l.b16 %v858
        %v943 = vunpack.c.h.b16 %v858
        %v944 = vunpack.c.l.b16 %v859
        %v945 = vunpack.c.l.b16 %v860
        %v946 = vunpack.c.h.b16 %v860
        %v947 = vunpack.c.l.b16 %v861
        %v948 = vunpack.c.l.b16 %v862
        %v949 = vunpack.c.h.b16 %v862
        %v950 = vunpack.c.l.b16 %v863
        %v951 = vunpack.c.l.b16 %v864
        %v952 = vunpack.c.h.b16 %v864
        %v953 = vunpack.c.l.b16 %v865
        %v954 = vunpack.c.l.b16 %v866
        %v955 = vunpack.c.h.b16 %v866
        %v956 = vunpack.c.l.b16 %v867
        %v957 = vunpack.c.l.b16 %v868
        %v958 = vunpack.c.h.b16 %v868
        %v959 = vunpack.c.l.b16 %v869
        %v960 = vunpack.c.l.b16 %v870
        %v961 = vunpack.c.h.b16 %v870
        %v962 = vunpack.c.l.b16 %v871
        %v963 = vunpack.c.l.b16 %v872
        %v964 = vunpack.c.h.b16 %v872
        %v965 = vunpack.c.l.b16 %v873
        %v966 = vunpack.c.l.b16 %v874
        %v967 = vunpack.c.h.b16 %v874
        %v968 = vunpack.c.l.b16 %v875
        %v969 = vunpack.c.l.b16 %v876
        %v970 = vunpack.c.h.b16 %v876
        %v971 = vunpack.c.l.b16 %v877
        %v972 = vunpack.c.l.b16 %v878
        %v973 = vunpack.c.h.b16 %v878
        %v974 = vunpack.c.l.b16 %v879
        %v975 = vunpack.c.l.b16 %v880
        %v976 = vunpack.c.h.b16 %v880
        %v977 = vunpack.c.l.b16 %v881
        %v978 = vunpack.c.l.b16 %v882
        %v979 = vunpack.c.h.b16 %v882
        %v980 = vunpack.c.l.b16 %v883
        %v981 = vpack.c.b16 %v936, %v933
        %v982 = vpack.c.b16 %v937, %v934
        %v983 = vpack.c.b16 %v938, %v935
        %v984 = vpack.c.b16 %v942, %v939
        %v985 = vpack.c.b16 %v943, %v940
        %v986 = vpack.c.b16 %v944, %v941
        %v987 = vpack.c.b16 %v948, %v945
        %v988 = vpack.c.b16 %v949, %v946
        %v989 = vpack.c.b16 %v950, %v947
        %v990 = vpack.c.b16 %v954, %v951
        %v991 = vpack.c.b16 %v955, %v952
        %v992 = vpack.c.b16 %v956, %v953
        %v993 = vpack.c.b16 %v960, %v957
        %v994 = vpack.c.b16 %v961, %v958
        %v995 = vpack.c.b16 %v962, %v959
        %v996 = vpack.c.b16 %v966, %v963
        %v997 = vpack.c.b16 %v967, %v964
        %v998 = vpack.c.b16 %v968, %v965
        %v999 = vpack.c.b16 %v972, %v969
        %v1000 = vpack.c.b16 %v973, %v970
        %v1001 = vpack.c.b16 %v974, %v971
        %v1002 = vpack.c.b16 %v978, %v975
        %v1003 = vpack.c.b16 %v979, %v976
        %v1004 = vpack.c.b16 %v980, %v977
        %1029 = vmatprep.subr.bf16.mxu0 %v982
        %1030 = vmatpush1.bf16.msra.mxu0 %v981
        %1031 = vmatprep.subr.bf16.mxu0 %v985
        %1032 = vmatpush1.bf16.msra.mxu0 %v984
        %1033 = vmatprep.subr.bf16.mxu0 %v988
        %1034 = vmatpush1.bf16.msra.mxu0 %v987
        %1035 = vmatprep.subr.bf16.mxu0 %v991
        %1036 = vmatpush1.bf16.msra.mxu0 %v990
        %1037 = vmatprep.subr.bf16.mxu0 %v994
        %1038 = vmatpush1.bf16.msra.mxu0 %v993
        %1039 = vmatprep.subr.bf16.mxu0 %v997
        %1040 = vmatpush1.bf16.msra.mxu0 %v996
        %1041 = vmatprep.subr.bf16.mxu0 %v1000
        %1042 = vmatpush1.bf16.msra.mxu0 %v999
        %1043 = vmatprep.subr.bf16.mxu0 %v1003
        %1044 = vmatpush1.bf16.msra.mxu0 %v1002
        %1045 = vmatprep.subr.bf16.mxu0 0
        %1046 = vmatpush1.bf16.msra.mxu0 0
        %1047 = vmatprep.subr.bf16.mxu0 0
        %1048 = vmatpush1.bf16.msra.mxu0 0
        %1049 = vmatprep.subr.bf16.mxu0 0
        %1050 = vmatpush1.bf16.msra.mxu0 0
        %1051 = vmatprep.subr.bf16.mxu0 0
        %1052 = vmatpush1.bf16.msra.mxu0 0
        %1053 = vmatprep.subr.bf16.mxu0 0
        %1054 = vmatpush1.bf16.msra.mxu0 0
        %1055 = vmatprep.subr.bf16.mxu0 0
        %1056 = vmatpush1.bf16.msra.mxu0 0
        %1057 = vmatprep.subr.bf16.mxu0 0
        %1058 = vmatpush1.bf16.msra.mxu0 0
        %1059 = vmatprep.subr.bf16.mxu0 0
        %1060 = vmatpush1.bf16.msra.mxu0 0
        %1061 = vmatprep.mubr.bf16.mxu0 0
        %1062 = vmatmul.mubr.bf16.gmra.mrb[0].mxu0 %v851
        %v1063 = vpop.f32.mrb[0].mxu0
        %v1064 = vadd.f32 %v889, %v1063
        %v1065 = vpop.f32.mrb[0].mxu0
        %v1066 = vadd.f32 %v893, %v1065
        %v1067 = vpop.f32.mrb[0].mxu0
        %v1068 = vadd.f32 %v889, %v1067
        %v1069 = vpop.f32.mrb[0].mxu0
        %v1070 = vadd.f32 %v893, %v1069
        %1071 = vdwg.mxu0
        %1072 = vmatprep.subr.bf16.mxu0 0
        %1073 = vmatpush1.bf16.msra.mxu0 %v983
        %1074 = vmatprep.subr.bf16.mxu0 0
        %1075 = vmatpush1.bf16.msra.mxu0 %v986
        %1076 = vmatprep.subr.bf16.mxu0 0
        %1077 = vmatpush1.bf16.msra.mxu0 %v989
        %1078 = vmatprep.subr.bf16.mxu0 0
        %1079 = vmatpush1.bf16.msra.mxu0 %v992
        %1080 = vmatprep.subr.bf16.mxu0 0
        %1081 = vmatpush1.bf16.msra.mxu0 %v995
        %1082 = vmatprep.subr.bf16.mxu0 0
        %1083 = vmatpush1.bf16.msra.mxu0 %v998
        %1084 = vmatprep.subr.bf16.mxu0 0
        %1085 = vmatpush1.bf16.msra.mxu0 %v1001
        %1086 = vmatprep.subr.bf16.mxu0 0
        %1087 = vmatpush1.bf16.msra.mxu0 %v1004
        %1088 = vmatprep.subr.bf16.mxu0 0
        %1089 = vmatpush1.bf16.msra.mxu0 0
        %1090 = vmatprep.subr.bf16.mxu0 0
        %1091 = vmatpush1.bf16.msra.mxu0 0
        %1092 = vmatprep.subr.bf16.mxu0 0
        %1093 = vmatpush1.bf16.msra.mxu0 0
        %1094 = vmatprep.subr.bf16.mxu0 0
        %1095 = vmatpush1.bf16.msra.mxu0 0
        %1096 = vmatprep.subr.bf16.mxu0 0
        %1097 = vmatpush1.bf16.msra.mxu0 0
        %1098 = vmatprep.subr.bf16.mxu0 0
        %1099 = vmatpush1.bf16.msra.mxu0 0
        %1100 = vmatprep.subr.bf16.mxu0 0
        %1101 = vmatpush1.bf16.msra.mxu0 0
        %1102 = vmatprep.subr.bf16.mxu0 0
        %1103 = vmatpush1.bf16.msra.mxu0 0
        %1104 = vmatprep.mubr.bf16.mxu0 0
        %1105 = vmatmul.mubr.bf16.gmra.mrb[0].mxu0 %v851
        %v1106 = vpop.f32.mrb[0].mxu0
        %v1107 = vadd.f32 %v897, %v1106
        %v1108 = vpop.f32.mrb[0].mxu0
        %v1109 = vpop.f32.mrb[0].mxu0
        %v1110 = vadd.f32 %v897, %v1109
        %v1111 = vpop.f32.mrb[0].mxu0
        %1112 = vdwg.mxu0
        %v1113 = vmul.f32 %v1064, 0.125
        %v1114 = vmul.f32 %v1068, 0.125
        %v1115 = vpack.c.bf16 %v1113, %v1113
        %v1116 = vpack.c.bf16 %v1114, %v1114
        %v1117 = vpack.c.bf16 %v1066, %v1066
        %v1118 = vpack.c.bf16 %v1070, %v1070
        %v1119 = vpack.c.bf16 %v1107, %v1107
        %v1120 = vpack.c.bf16 %v1110, %v1110
        %vm1121 = vcmask 523264
        %v1123 = vsel %vm1121, %v1115, 0
        %v1126 = vsel %vm1121, %v1117, 0
        %1128 = vmatprep.subr.bf16.mxu0 0
        %1129 = vmatpush1.bf16.xpose.msra.mxu0 %v1126
        %1130 = vmatprep.subr.bf16.mxu0 0
        %1131 = vmatpush1.bf16.xpose.msra.mxu0 0
        %1132 = vmatprep.subr.bf16.mxu0 0
        %1133 = vmatpush1.bf16.xpose.msra.mxu0 0
        %1134 = vmatprep.subr.bf16.mxu0 0
        %1135 = vmatpush1.bf16.xpose.msra.mxu0 0
        %1136 = vmatprep.subr.bf16.mxu0 0
        %1137 = vmatpush1.bf16.xpose.msra.mxu0 0
        %1138 = vmatprep.subr.bf16.mxu0 0
        %1139 = vmatpush1.bf16.xpose.msra.mxu0 0
        %1140 = vmatprep.subr.bf16.mxu0 0
        %1141 = vmatpush1.bf16.xpose.msra.mxu0 0
        %1142 = vmatprep.subr.bf16.mxu0 0
        %1143 = vmatpush1.bf16.xpose.msra.mxu0 0
        %1144 = vmatprep.subr.bf16.mxu0 0
        %1145 = vmatpush1.bf16.xpose.msra.mxu0 0
        %1146 = vmatprep.subr.bf16.mxu0 0
        %1147 = vmatpush1.bf16.xpose.msra.mxu0 0
        %1148 = vmatprep.subr.bf16.mxu0 0
        %1149 = vmatpush1.bf16.xpose.msra.mxu0 0
        %1150 = vmatprep.subr.bf16.mxu0 0
        %1151 = vmatpush1.bf16.xpose.msra.mxu0 0
        %1152 = vmatprep.subr.bf16.mxu0 0
        %1153 = vmatpush1.bf16.xpose.msra.mxu0 0
        %1154 = vmatprep.subr.bf16.mxu0 0
        %1155 = vmatpush1.bf16.xpose.msra.mxu0 0
        %1156 = vmatprep.subr.bf16.mxu0 0
        %1157 = vmatpush1.bf16.xpose.msra.mxu0 0
        %1158 = vmatprep.subr.bf16.mxu0 0
        %1159 = vmatpush1.bf16.xpose.msra.mxu0 0
        %1160 = vmatprep.mubr.bf16.mxu0 0
        %1161 = vmatmul.mubr.bf16.gmra.mrb[0].mxu0 %v1123
        %v1162 = vpop.f32.mrb[0].mxu0
        %v1163 = vadd.f32 0.0, %v1162
        %v1164 = vpop.f32.mrb[0].mxu0
        %v1165 = vpop.f32.mrb[0].mxu0
        %v1166 = vpop.f32.mrb[0].mxu0
        %1167 = vdwg.mxu0
        %v1169 = vsel %vm1121, %v1116, 0
        %v1172 = vsel %vm1121, %v1118, 0
        %1174 = vmatprep.subr.bf16.mxu0 0
        %1175 = vmatpush1.bf16.xpose.msra.mxu0 %v1172
        %1176 = vmatprep.subr.bf16.mxu0 0
        %1177 = vmatpush1.bf16.xpose.msra.mxu0 0
        %1178 = vmatprep.subr.bf16.mxu0 0
        %1179 = vmatpush1.bf16.xpose.msra.mxu0 0
        %1180 = vmatprep.subr.bf16.mxu0 0
        %1181 = vmatpush1.bf16.xpose.msra.mxu0 0
        %1182 = vmatprep.subr.bf16.mxu0 0
        %1183 = vmatpush1.bf16.xpose.msra.mxu0 0
        %1184 = vmatprep.subr.bf16.mxu0 0
        %1185 = vmatpush1.bf16.xpose.msra.mxu0 0
        %1186 = vmatprep.subr.bf16.mxu0 0
        %1187 = vmatpush1.bf16.xpose.msra.mxu0 0
        %1188 = vmatprep.subr.bf16.mxu0 0
        %1189 = vmatpush1.bf16.xpose.msra.mxu0 0
        %1190 = vmatprep.subr.bf16.mxu0 0
        %1191 = vmatpush1.bf16.xpose.msra.mxu0 0
        %1192 = vmatprep.subr.bf16.mxu0 0
        %1193 = vmatpush1.bf16.xpose.msra.mxu0 0
        %1194 = vmatprep.subr.bf16.mxu0 0
        %1195 = vmatpush1.bf16.xpose.msra.mxu0 0
        %1196 = vmatprep.subr.bf16.mxu0 0
        %1197 = vmatpush1.bf16.xpose.msra.mxu0 0
        %1198 = vmatprep.subr.bf16.mxu0 0
        %1199 = vmatpush1.bf16.xpose.msra.mxu0 0
        %1200 = vmatprep.subr.bf16.mxu0 0
        %1201 = vmatpush1.bf16.xpose.msra.mxu0 0
        %1202 = vmatprep.subr.bf16.mxu0 0
        %1203 = vmatpush1.bf16.xpose.msra.mxu0 0
        %1204 = vmatprep.subr.bf16.mxu0 0
        %1205 = vmatpush1.bf16.xpose.msra.mxu0 0
        %1206 = vmatprep.mubr.bf16.mxu0 0
        %1207 = vmatmul.mubr.bf16.gmra.mrb[0].mxu0 %v1169
        %v1208 = vpop.f32.mrb[0].mxu0
        %v1209 = vadd.f32 0.0, %v1208
        %v1210 = vpop.f32.mrb[0].mxu0
        %v1211 = vpop.f32.mrb[0].mxu0
        %v1212 = vpop.f32.mrb[0].mxu0
        %1213 = vdwg.mxu0
        %vm1214 = vcmask 64512
        %v1215 = vsel %vm1214, %v1163, -inf
        %1216 = vmax.xlane.f32.xlu0 %v1215
        %v1217 = vpop.xlane.xlu0 %1216
        %v1218 = vsel %vm1214, %v1209, -inf
        %1219 = vmax.xlane.f32.xlu0 %v1218
        %v1220 = vpop.xlane.xlu0 %1219
        %v1221 = vsub.f32 %v1163, %v1217
        %v1222 = vsub.f32 %v1209, %v1220
        %v1223 = vmul.f32 %v1221, 1.442695
        %v1224 = vpow.pop %v1223
        %v1225 = vmul.f32 %v1222, 1.442695
        %v1226 = vpow.pop %v1225
        %v1227 = vsel %vm1214, %v1224, 0.0
        %1228 = vadd.xlane.f32.xlu0 %v1227
        %v1229 = vpop.xlane.xlu0 %1228
        %v1230 = vsel %vm1214, %v1226, 0.0
        %1231 = vadd.xlane.f32.xlu0 %v1230
        %v1232 = vpop.xlane.xlu0 %1231
        %v1233 = vrcp.pop %v1229
        %v1234 = vrcp.pop %v1232
        %v1235 = vmul.f32 %v1224, %v1233
        %v1236 = vmul.f32 %v1226, %v1234
        %v1237 = vadd.f32 %v1235, 0.0
        %v1238 = vadd.f32 %v1236, 0.0
        %v1239 = vpack.c.bf16 %v1235, %v1235
        %v1240 = vpack.c.bf16 %v1236, %v1236
        %v1242 = vsel %vm1214, %v1239, 0
        %vm1244 = vcmask 1043456
        %v1246 = vsel %vm1244, %v1119, 0
        %1248 = vmatprep.subr.bf16.mxu0 0
        %1249 = vmatpush1.bf16.msra.mxu0 %v1246
        %1250 = vmatprep.subr.bf16.mxu0 0
        %1251 = vmatpush1.bf16.msra.mxu0 0
        %1252 = vmatprep.subr.bf16.mxu0 0
        %1253 = vmatpush1.bf16.msra.mxu0 0
        %1254 = vmatprep.subr.bf16.mxu0 0
        %1255 = vmatpush1.bf16.msra.mxu0 0
        %1256 = vmatprep.subr.bf16.mxu0 0
        %1257 = vmatpush1.bf16.msra.mxu0 0
        %1258 = vmatprep.subr.bf16.mxu0 0
        %1259 = vmatpush1.bf16.msra.mxu0 0
        %1260 = vmatprep.subr.bf16.mxu0 0
        %1261 = vmatpush1.bf16.msra.mxu0 0
        %1262 = vmatprep.subr.bf16.mxu0 0
        %1263 = vmatpush1.bf16.msra.mxu0 0
        %1264 = vmatprep.subr.bf16.mxu0 0
        %1265 = vmatpush1.bf16.msra.mxu0 0
        %1266 = vmatprep.subr.bf16.mxu0 0
        %1267 = vmatpush1.bf16.msra.mxu0 0
        %1268 = vmatprep.subr.bf16.mxu0 0
        %1269 = vmatpush1.bf16.msra.mxu0 0
        %1270 = vmatprep.subr.bf16.mxu0 0
        %1271 = vmatpush1.bf16.msra.mxu0 0
        %1272 = vmatprep.subr.bf16.mxu0 0
        %1273 = vmatpush1.bf16.msra.mxu0 0
        %1274 = vmatprep.subr.bf16.mxu0 0
        %1275 = vmatpush1.bf16.msra.mxu0 0
        %1276 = vmatprep.subr.bf16.mxu0 0
        %1277 = vmatpush1.bf16.msra.mxu0 0
        %1278 = vmatprep.subr.bf16.mxu0 0
        %1279 = vmatpush1.bf16.msra.mxu0 0
        %1280 = vmatprep.mubr.bf16.mxu0 0
        %1281 = vmatmul.mubr.bf16.gmra.mrb[0].mxu0 %v1242
        %v1282 = vpop.f32.mrb[0].mxu0
        %v1283 = vadd.f32 0.0, %v1282
        %v1284 = vpop.f32.mrb[0].mxu0
        %v1285 = vpop.f32.mrb[0].mxu0
        %v1286 = vpop.f32.mrb[0].mxu0
        %1287 = vdwg.mxu0
        %v1289 = vsel %vm1214, %v1240, 0
        %v1292 = vsel %vm1244, %v1120, 0
        %1294 = vmatprep.subr.bf16.mxu0 0
        %1295 = vmatpush1.bf16.msra.mxu0 %v1292
        %1296 = vmatprep.subr.bf16.mxu0 0
        %1297 = vmatpush1.bf16.msra.mxu0 0
        %1298 = vmatprep.subr.bf16.mxu0 0
        %1299 = vmatpush1.bf16.msra.mxu0 0
        %1300 = vmatprep.subr.bf16.mxu0 0
        %1301 = vmatpush1.bf16.msra.mxu0 0
        %1302 = vmatprep.subr.bf16.mxu0 0
        %1303 = vmatpush1.bf16.msra.mxu0 0
        %1304 = vmatprep.subr.bf16.mxu0 0
        %1305 = vmatpush1.bf16.msra.mxu0 0
        %1306 = vmatprep.subr.bf16.mxu0 0
        %1307 = vmatpush1.bf16.msra.mxu0 0
        %1308 = vmatprep.subr.bf16.mxu0 0
        %1309 = vmatpush1.bf16.msra.mxu0 0
        %1310 = vmatprep.subr.bf16.mxu0 0
        %1311 = vmatpush1.bf16.msra.mxu0 0
        %1312 = vmatprep.subr.bf16.mxu0 0
        %1313 = vmatpush1.bf16.msra.mxu0 0
        %1314 = vmatprep.subr.bf16.mxu0 0
        %1315 = vmatpush1.bf16.msra.mxu0 0
        %1316 = vmatprep.subr.bf16.mxu0 0
        %1317 = vmatpush1.bf16.msra.mxu0 0
        %1318 = vmatprep.subr.bf16.mxu0 0
        %1319 = vmatpush1.bf16.msra.mxu0 0
        %1320 = vmatprep.subr.bf16.mxu0 0
        %1321 = vmatpush1.bf16.msra.mxu0 0
        %1322 = vmatprep.subr.bf16.mxu0 0
        %1323 = vmatpush1.bf16.msra.mxu0 0
        %1324 = vmatprep.subr.bf16.mxu0 0
        %1325 = vmatpush1.bf16.msra.mxu0 0
        %1326 = vmatprep.mubr.bf16.mxu0 0
        %1327 = vmatmul.mubr.bf16.gmra.mrb[0].mxu0 %v1289
        %v1328 = vpop.f32.mrb[0].mxu0
        %v1329 = vadd.f32 0.0, %v1328
        %v1330 = vpop.f32.mrb[0].mxu0
        %v1331 = vpop.f32.mrb[0].mxu0
        %v1332 = vpop.f32.mrb[0].mxu0
        %1333 = vdwg.mxu0
        %1335 = vrot.lane.b32.xlu0 %v1115, 64
        %v1336 = vpop.permute.xlu0 %1335
        %1338 = vrot.lane.b32.xlu0 %v1117, 64
        %v1339 = vpop.permute.xlu0 %1338
        %v1341 = vsel %vm1121, %v1336, 0
        %v1344 = vsel %vm1121, %v1339, 0
        %1346 = vmatprep.subr.bf16.mxu0 0
        %1347 = vmatpush1.bf16.xpose.msra.mxu0 %v1344
        %1348 = vmatprep.subr.bf16.mxu0 0
        %1349 = vmatpush1.bf16.xpose.msra.mxu0 0
        %1350 = vmatprep.subr.bf16.mxu0 0
        %1351 = vmatpush1.bf16.xpose.msra.mxu0 0
        %1352 = vmatprep.subr.bf16.mxu0 0
        %1353 = vmatpush1.bf16.xpose.msra.mxu0 0
        %1354 = vmatprep.subr.bf16.mxu0 0
        %1355 = vmatpush1.bf16.xpose.msra.mxu0 0
        %1356 = vmatprep.subr.bf16.mxu0 0
        %1357 = vmatpush1.bf16.xpose.msra.mxu0 0
        %1358 = vmatprep.subr.bf16.mxu0 0
        %1359 = vmatpush1.bf16.xpose.msra.mxu0 0
        %1360 = vmatprep.subr.bf16.mxu0 0
        %1361 = vmatpush1.bf16.xpose.msra.mxu0 0
        %1362 = vmatprep.subr.bf16.mxu0 0
        %1363 = vmatpush1.bf16.xpose.msra.mxu0 0
        %1364 = vmatprep.subr.bf16.mxu0 0
        %1365 = vmatpush1.bf16.xpose.msra.mxu0 0
        %1366 = vmatprep.subr.bf16.mxu0 0
        %1367 = vmatpush1.bf16.xpose.msra.mxu0 0
        %1368 = vmatprep.subr.bf16.mxu0 0
        %1369 = vmatpush1.bf16.xpose.msra.mxu0 0
        %1370 = vmatprep.subr.bf16.mxu0 0
        %1371 = vmatpush1.bf16.xpose.msra.mxu0 0
        %1372 = vmatprep.subr.bf16.mxu0 0
        %1373 = vmatpush1.bf16.xpose.msra.mxu0 0
        %1374 = vmatprep.subr.bf16.mxu0 0
        %1375 = vmatpush1.bf16.xpose.msra.mxu0 0
        %1376 = vmatprep.subr.bf16.mxu0 0
        %1377 = vmatpush1.bf16.xpose.msra.mxu0 0
        %1378 = vmatprep.mubr.bf16.mxu0 0
        %1379 = vmatmul.mubr.bf16.gmra.mrb[0].mxu0 %v1341
        %v1380 = vpop.f32.mrb[0].mxu0
        %v1381 = vadd.f32 0.0, %v1380
        %v1382 = vpop.f32.mrb[0].mxu0
        %v1383 = vpop.f32.mrb[0].mxu0
        %v1384 = vpop.f32.mrb[0].mxu0
        %1385 = vdwg.mxu0
        %1387 = vrot.lane.b32.xlu0 %v1116, 64
        %v1388 = vpop.permute.xlu0 %1387
        %1390 = vrot.lane.b32.xlu0 %v1118, 64
        %v1391 = vpop.permute.xlu0 %1390
        %v1393 = vsel %vm1121, %v1388, 0
        %v1396 = vsel %vm1121, %v1391, 0
        %1398 = vmatprep.subr.bf16.mxu0 0
        %1399 = vmatpush1.bf16.xpose.msra.mxu0 %v1396
        %1400 = vmatprep.subr.bf16.mxu0 0
        %1401 = vmatpush1.bf16.xpose.msra.mxu0 0
        %1402 = vmatprep.subr.bf16.mxu0 0
        %1403 = vmatpush1.bf16.xpose.msra.mxu0 0
        %1404 = vmatprep.subr.bf16.mxu0 0
        %1405 = vmatpush1.bf16.xpose.msra.mxu0 0
        %1406 = vmatprep.subr.bf16.mxu0 0
        %1407 = vmatpush1.bf16.xpose.msra.mxu0 0
        %1408 = vmatprep.subr.bf16.mxu0 0
        %1409 = vmatpush1.bf16.xpose.msra.mxu0 0
        %1410 = vmatprep.subr.bf16.mxu0 0
        %1411 = vmatpush1.bf16.xpose.msra.mxu0 0
        %1412 = vmatprep.subr.bf16.mxu0 0
        %1413 = vmatpush1.bf16.xpose.msra.mxu0 0
        %1414 = vmatprep.subr.bf16.mxu0 0
        %1415 = vmatpush1.bf16.xpose.msra.mxu0 0
        %1416 = vmatprep.subr.bf16.mxu0 0
        %1417 = vmatpush1.bf16.xpose.msra.mxu0 0
        %1418 = vmatprep.subr.bf16.mxu0 0
        %1419 = vmatpush1.bf16.xpose.msra.mxu0 0
        %1420 = vmatprep.subr.bf16.mxu0 0
        %1421 = vmatpush1.bf16.xpose.msra.mxu0 0
        %1422 = vmatprep.subr.bf16.mxu0 0
        %1423 = vmatpush1.bf16.xpose.msra.mxu0 0
        %1424 = vmatprep.subr.bf16.mxu0 0
        %1425 = vmatpush1.bf16.xpose.msra.mxu0 0
        %1426 = vmatprep.subr.bf16.mxu0 0
        %1427 = vmatpush1.bf16.xpose.msra.mxu0 0
        %1428 = vmatprep.subr.bf16.mxu0 0
        %1429 = vmatpush1.bf16.xpose.msra.mxu0 0
        %1430 = vmatprep.mubr.bf16.mxu0 0
        %1431 = vmatmul.mubr.bf16.gmra.mrb[0].mxu0 %v1393
        %v1432 = vpop.f32.mrb[0].mxu0
        %v1433 = vadd.f32 0.0, %v1432
        %v1434 = vpop.f32.mrb[0].mxu0
        %v1435 = vpop.f32.mrb[0].mxu0
        %v1436 = vpop.f32.mrb[0].mxu0
        %1437 = vdwg.mxu0
        %v1438 = vsel %vm1214, %v1381, -inf
        %1439 = vmax.xlane.f32.xlu0 %v1438
        %v1440 = vpop.xlane.xlu0 %1439
        %v1441 = vsel %vm1214, %v1433, -inf
        %1442 = vmax.xlane.f32.xlu0 %v1441
        %v1443 = vpop.xlane.xlu0 %1442
        %v1444 = vsub.f32 %v1381, %v1440
        %v1445 = vsub.f32 %v1433, %v1443
        %v1446 = vmul.f32 %v1444, 1.442695
        %v1447 = vpow.pop %v1446
        %v1448 = vmul.f32 %v1445, 1.442695
        %v1449 = vpow.pop %v1448
        %v1450 = vsel %vm1214, %v1447, 0.0
        %1451 = vadd.xlane.f32.xlu0 %v1450
        %v1452 = vpop.xlane.xlu0 %1451
        %v1453 = vsel %vm1214, %v1449, 0.0
        %1454 = vadd.xlane.f32.xlu0 %v1453
        %v1455 = vpop.xlane.xlu0 %1454
        %v1456 = vrcp.pop %v1452
        %v1457 = vrcp.pop %v1455
        %v1458 = vmul.f32 %v1447, %v1456
        %v1459 = vmul.f32 %v1449, %v1457
        %v1460 = vadd.f32 %v1237, %v1458
        %v1461 = vadd.f32 %v1238, %v1459
        %v1462 = vpack.c.bf16 %v1458, %v1458
        %v1463 = vpack.c.bf16 %v1459, %v1459
        %1465 = vrot.lane.b32.xlu0 %v1119, 64
        %v1466 = vpop.permute.xlu0 %1465
        %v1468 = vsel %vm1214, %v1462, 0
        %v1471 = vsel %vm1244, %v1466, 0
        %1473 = vmatprep.subr.bf16.mxu0 0
        %1474 = vmatpush1.bf16.msra.mxu0 %v1471
        %1475 = vmatprep.subr.bf16.mxu0 0
        %1476 = vmatpush1.bf16.msra.mxu0 0
        %1477 = vmatprep.subr.bf16.mxu0 0
        %1478 = vmatpush1.bf16.msra.mxu0 0
        %1479 = vmatprep.subr.bf16.mxu0 0
        %1480 = vmatpush1.bf16.msra.mxu0 0
        %1481 = vmatprep.subr.bf16.mxu0 0
        %1482 = vmatpush1.bf16.msra.mxu0 0
        %1483 = vmatprep.subr.bf16.mxu0 0
        %1484 = vmatpush1.bf16.msra.mxu0 0
        %1485 = vmatprep.subr.bf16.mxu0 0
        %1486 = vmatpush1.bf16.msra.mxu0 0
        %1487 = vmatprep.subr.bf16.mxu0 0
        %1488 = vmatpush1.bf16.msra.mxu0 0
        %1489 = vmatprep.subr.bf16.mxu0 0
        %1490 = vmatpush1.bf16.msra.mxu0 0
        %1491 = vmatprep.subr.bf16.mxu0 0
        %1492 = vmatpush1.bf16.msra.mxu0 0
        %1493 = vmatprep.subr.bf16.mxu0 0
        %1494 = vmatpush1.bf16.msra.mxu0 0
        %1495 = vmatprep.subr.bf16.mxu0 0
        %1496 = vmatpush1.bf16.msra.mxu0 0
        %1497 = vmatprep.subr.bf16.mxu0 0
        %1498 = vmatpush1.bf16.msra.mxu0 0
        %1499 = vmatprep.subr.bf16.mxu0 0
        %1500 = vmatpush1.bf16.msra.mxu0 0
        %1501 = vmatprep.subr.bf16.mxu0 0
        %1502 = vmatpush1.bf16.msra.mxu0 0
        %1503 = vmatprep.subr.bf16.mxu0 0
        %1504 = vmatpush1.bf16.msra.mxu0 0
        %1505 = vmatprep.mubr.bf16.mxu0 0
        %1506 = vmatmul.mubr.bf16.gmra.mrb[0].mxu0 %v1468
        %v1507 = vpop.f32.mrb[0].mxu0
        %v1508 = vadd.f32 0.0, %v1507
        %v1509 = vpop.f32.mrb[0].mxu0
        %v1510 = vpop.f32.mrb[0].mxu0
        %v1511 = vpop.f32.mrb[0].mxu0
        %1512 = vdwg.mxu0
        %1514 = vrot.lane.b32.xlu0 %v1120, 64
        %v1515 = vpop.permute.xlu0 %1514
        %v1517 = vsel %vm1214, %v1463, 0
        %v1520 = vsel %vm1244, %v1515, 0
        %1522 = vmatprep.subr.bf16.mxu0 0
        %1523 = vmatpush1.bf16.msra.mxu0 %v1520
        %1524 = vmatprep.subr.bf16.mxu0 0
        %1525 = vmatpush1.bf16.msra.mxu0 0
        %1526 = vmatprep.subr.bf16.mxu0 0
        %1527 = vmatpush1.bf16.msra.mxu0 0
        %1528 = vmatprep.subr.bf16.mxu0 0
        %1529 = vmatpush1.bf16.msra.mxu0 0
        %1530 = vmatprep.subr.bf16.mxu0 0
        %1531 = vmatpush1.bf16.msra.mxu0 0
        %1532 = vmatprep.subr.bf16.mxu0 0
        %1533 = vmatpush1.bf16.msra.mxu0 0
        %1534 = vmatprep.subr.bf16.mxu0 0
        %1535 = vmatpush1.bf16.msra.mxu0 0
        %1536 = vmatprep.subr.bf16.mxu0 0
        %1537 = vmatpush1.bf16.msra.mxu0 0
        %1538 = vmatprep.subr.bf16.mxu0 0
        %1539 = vmatpush1.bf16.msra.mxu0 0
        %1540 = vmatprep.subr.bf16.mxu0 0
        %1541 = vmatpush1.bf16.msra.mxu0 0
        %1542 = vmatprep.subr.bf16.mxu0 0
        %1543 = vmatpush1.bf16.msra.mxu0 0
        %1544 = vmatprep.subr.bf16.mxu0 0
        %1545 = vmatpush1.bf16.msra.mxu0 0
        %1546 = vmatprep.subr.bf16.mxu0 0
        %1547 = vmatpush1.bf16.msra.mxu0 0
        %1548 = vmatprep.subr.bf16.mxu0 0
        %1549 = vmatpush1.bf16.msra.mxu0 0
        %1550 = vmatprep.subr.bf16.mxu0 0
        %1551 = vmatpush1.bf16.msra.mxu0 0
        %1552 = vmatprep.subr.bf16.mxu0 0
        %1553 = vmatpush1.bf16.msra.mxu0 0
        %1554 = vmatprep.mubr.bf16.mxu0 0
        %1555 = vmatmul.mubr.bf16.gmra.mrb[0].mxu0 %v1517
        %v1556 = vpop.f32.mrb[0].mxu0
        %v1557 = vadd.f32 0.0, %v1556
        %v1558 = vpop.f32.mrb[0].mxu0
        %v1559 = vpop.f32.mrb[0].mxu0
        %v1560 = vpop.f32.mrb[0].mxu0
        %1561 = vdwg.mxu0
        %1564 = vrot.lane.b32.xlu0 %v1508, 64
        %v1565 = vpop.permute.xlu0 %1564
        %1566 = vrot.lane.b32.xlu0 %v1557, 64
        %v1567 = vpop.permute.xlu0 %1566
        %v1570 = vsel %vm1121, %v1283, %v1565
        %v1571 = vsel %vm1121, %v1329, %v1567
        %v1572 = vpack.c.bf16 %v1571, %v1570
        %v1573 = vld [vmem:[%s670] sm:$0xf]
        %v1574 = vld [vmem:[%s670 + $0x4] sm:$0xf]
        %v1575 = vld [vmem:[%s670 + $0x8] sm:$0xf]
        %v1576 = vld [vmem:[%s670 + $0xc] sm:$0xf]
        %v1577 = vld [vmem:[%s670 + $0x10] sm:$0xf]
        %v1578 = vld [vmem:[%s670 + $0x14] sm:$0xf]
        %v1579 = vld [vmem:[%s670 + $0x18] sm:$0xf]
        %v1580 = vld [vmem:[%s670 + $0x1c] sm:$0xf]
        %v1581 = vld [vmem:[%s670 + $0x20] sm:$0xf]
        %v1582 = vld [vmem:[%s670 + $0x24] sm:$0xf]
        %v1583 = vld [vmem:[%s670 + $0x28] sm:$0xf]
        %v1584 = vld [vmem:[%s670 + $0x2c] sm:$0xf]
        %v1585 = vld [vmem:[%s670 + $0x30] sm:$0xf]
        %v1586 = vld [vmem:[%s670 + $0x34] sm:$0xf]
        %v1587 = vld [vmem:[%s670 + $0x38] sm:$0xf]
        %v1588 = vld [vmem:[%s670 + $0x3c] sm:$0xf]
        %v1589 = vld [vmem:[%s783] sm:$0x1]
        %v1591 = vlaneseq
        %v1592 = vshrl.u32 %v1591, 7
        %v1593 = vsub.s32 0, %v1592
        %v1594 = vrot.slane %v1589, %v1593
        %v1612 = vunpack.c.l.b16 %v1573
        %v1613 = vunpack.c.l.b16 %v1574
        %v1614 = vunpack.c.l.b16 %v1575
        %v1615 = vunpack.c.l.b16 %v1576
        %v1616 = vunpack.c.l.b16 %v1577
        %v1617 = vunpack.c.l.b16 %v1578
        %v1618 = vunpack.c.l.b16 %v1579
        %v1619 = vunpack.c.l.b16 %v1580
        %v1620 = vunpack.c.l.b16 %v1581
        %v1621 = vunpack.c.l.b16 %v1582
        %v1622 = vunpack.c.l.b16 %v1583
        %v1623 = vunpack.c.l.b16 %v1584
        %v1624 = vunpack.c.l.b16 %v1585
        %v1625 = vunpack.c.l.b16 %v1586
        %v1626 = vunpack.c.l.b16 %v1587
        %v1627 = vunpack.c.l.b16 %v1588
        %v1628 = vpack.c.b16 %v1613, %v1612
        %v1629 = vpack.c.b16 %v1615, %v1614
        %v1630 = vpack.c.b16 %v1617, %v1616
        %v1631 = vpack.c.b16 %v1619, %v1618
        %v1632 = vpack.c.b16 %v1621, %v1620
        %v1633 = vpack.c.b16 %v1623, %v1622
        %v1634 = vpack.c.b16 %v1625, %v1624
        %v1635 = vpack.c.b16 %v1627, %v1626
        %1644 = vmatprep.subr.bf16.mxu0 0
        %1645 = vmatpush1.bf16.msra.mxu0 %v1628
        %1646 = vmatprep.subr.bf16.mxu0 0
        %1647 = vmatpush1.bf16.msra.mxu0 %v1629
        %1648 = vmatprep.subr.bf16.mxu0 0
        %1649 = vmatpush1.bf16.msra.mxu0 %v1630
        %1650 = vmatprep.subr.bf16.mxu0 0
        %1651 = vmatpush1.bf16.msra.mxu0 %v1631
        %1652 = vmatprep.subr.bf16.mxu0 0
        %1653 = vmatpush1.bf16.msra.mxu0 %v1632
        %1654 = vmatprep.subr.bf16.mxu0 0
        %1655 = vmatpush1.bf16.msra.mxu0 %v1633
        %1656 = vmatprep.subr.bf16.mxu0 0
        %1657 = vmatpush1.bf16.msra.mxu0 %v1634
        %1658 = vmatprep.subr.bf16.mxu0 0
        %1659 = vmatpush1.bf16.msra.mxu0 %v1635
        %1660 = vmatprep.subr.bf16.mxu0 0
        %1661 = vmatpush1.bf16.msra.mxu0 0
        %1662 = vmatprep.subr.bf16.mxu0 0
        %1663 = vmatpush1.bf16.msra.mxu0 0
        %1664 = vmatprep.subr.bf16.mxu0 0
        %1665 = vmatpush1.bf16.msra.mxu0 0
        %1666 = vmatprep.subr.bf16.mxu0 0
        %1667 = vmatpush1.bf16.msra.mxu0 0
        %1668 = vmatprep.subr.bf16.mxu0 0
        %1669 = vmatpush1.bf16.msra.mxu0 0
        %1670 = vmatprep.subr.bf16.mxu0 0
        %1671 = vmatpush1.bf16.msra.mxu0 0
        %1672 = vmatprep.subr.bf16.mxu0 0
        %1673 = vmatpush1.bf16.msra.mxu0 0
        %1674 = vmatprep.subr.bf16.mxu0 0
        %1675 = vmatpush1.bf16.msra.mxu0 0
        %1676 = vmatprep.mubr.bf16.mxu0 0
        %1677 = vmatmul.mubr.bf16.gmra.mrb[0].mxu0 %v1572
        %v1678 = vpop.f32.mrb[0].mxu0
        %v1679 = vadd.f32 %v1594, %v1678
        %v1680 = vpop.f32.mrb[0].mxu0
        %v1681 = vpop.f32.mrb[0].mxu0
        %v1682 = vadd.f32 %v1594, %v1681
        %v1683 = vpop.f32.mrb[0].mxu0
        %1684 = vdwg.mxu0
        %v1685 = vadd.f32 %v808, %v1679
        %v1686 = vadd.f32 %v809, %v1682
        %v1687 = vld [vmem:[%s786] sm:$0x1]
        %v1688 = vld [vmem:[%s789] sm:$0x1]
        %1689 = vadd.xlane.f32.xlu0 %v1685
        %v1690 = vpop.xlane.xlu0 %1689
        %1691 = vadd.xlane.f32.xlu0 %v1686
        %v1692 = vpop.xlane.xlu0 %1691
        %v1693 = vmul.f32 %v1690, %v816
        %v1694 = vmul.f32 %v1692, %v816
        %v1695 = vsub.f32 %v1685, %v1693
        %v1696 = vsub.f32 %v1686, %v1694
        %v1697 = vmul.f32 %v1695, %v1695
        %v1698 = vmul.f32 %v1696, %v1696
        %1699 = vadd.xlane.f32.xlu0 %v1697
        %v1700 = vpop.xlane.xlu0 %1699
        %1701 = vadd.xlane.f32.xlu0 %v1698
        %v1702 = vpop.xlane.xlu0 %1701
        %v1703 = vmul.f32 %v1700, %v816
        %v1704 = vmul.f32 %v1702, %v816
        %v1705 = vadd.f32 %v1703, 1e-05
        %v1706 = vadd.f32 %v1704, 1e-05
        %v1707 = vrsqrt.pop %v1705
        %v1708 = vrsqrt.pop %v1706
        %v1709 = vmul.f32 %v1695, %v1707
        %v1710 = vmul.f32 %v1696, %v1708
        %v1712 = vlaneseq
        %v1713 = vshrl.u32 %v1712, 7
        %v1714 = vsub.s32 0, %v1713
        %v1715 = vrot.slane %v1687, %v1714
        %v1717 = vmul.f32 %v1709, %v1715
        %v1718 = vmul.f32 %v1710, %v1715
        %v1720 = vlaneseq
        %v1721 = vshrl.u32 %v1720, 7
        %v1722 = vsub.s32 0, %v1721
        %v1723 = vrot.slane %v1688, %v1722
        %v1725 = vadd.f32 %v1717, %v1723
        %v1726 = vadd.f32 %v1718, %v1723
        %v1727 = vpack.c.bf16 %v1726, %v1725
        %v1728 = vld [vmem:[%s679] sm:$0xff]
        %v1729 = vld [vmem:[%s679 + $0x8] sm:$0xff]
        %v1730 = vld [vmem:[%s679 + $0x10] sm:$0xff]
        %v1731 = vld [vmem:[%s679 + $0x18] sm:$0xff]
        %v1732 = vld [vmem:[%s679 + $0x20] sm:$0xff]
        %v1733 = vld [vmem:[%s679 + $0x28] sm:$0xff]
        %v1734 = vld [vmem:[%s679 + $0x30] sm:$0xff]
        %v1735 = vld [vmem:[%s679 + $0x38] sm:$0xff]
        %v1736 = vld [vmem:[%s679 + $0x40] sm:$0xff]
        %v1737 = vld [vmem:[%s679 + $0x48] sm:$0xff]
        %v1738 = vld [vmem:[%s679 + $0x50] sm:$0xff]
        %v1739 = vld [vmem:[%s679 + $0x58] sm:$0xff]
        %v1740 = vld [vmem:[%s679 + $0x60] sm:$0xff]
        %v1741 = vld [vmem:[%s679 + $0x68] sm:$0xff]
        %v1742 = vld [vmem:[%s679 + $0x70] sm:$0xff]
        %v1743 = vld [vmem:[%s679 + $0x78] sm:$0xff]
        %v1744 = vld [vmem:[%s679 + $0x80] sm:$0xff]
        %v1745 = vld [vmem:[%s679 + $0x88] sm:$0xff]
        %v1746 = vld [vmem:[%s679 + $0x90] sm:$0xff]
        %v1747 = vld [vmem:[%s679 + $0x98] sm:$0xff]
        %v1748 = vld [vmem:[%s679 + $0xa0] sm:$0xff]
        %v1749 = vld [vmem:[%s679 + $0xa8] sm:$0xff]
        %v1750 = vld [vmem:[%s679 + $0xb0] sm:$0xff]
        %v1751 = vld [vmem:[%s679 + $0xb8] sm:$0xff]
        %v1752 = vld [vmem:[%s679 + $0xc0] sm:$0xff]
        %v1753 = vld [vmem:[%s679 + $0xc8] sm:$0xff]
        %v1754 = vld [vmem:[%s679 + $0xd0] sm:$0xff]
        %v1755 = vld [vmem:[%s679 + $0xd8] sm:$0xff]
        %v1756 = vld [vmem:[%s679 + $0xe0] sm:$0xff]
        %v1757 = vld [vmem:[%s679 + $0xe8] sm:$0xff]
        %v1758 = vld [vmem:[%s679 + $0xf0] sm:$0xff]
        %v1759 = vld [vmem:[%s679 + $0xf8] sm:$0xff]
        %v1760 = vld [vmem:[%s793] sm:$0xf]
        %v1762 = vlaneseq
        %v1763 = vshrl.u32 %v1762, 7
        %v1764 = vsub.s32 0, %v1763
        %v1765 = vrot.slane %v1760, %v1764
        %v1766 = vlaneseq
        %v1767 = vshrl.u32 %v1766, 7
        %v1768 = vsub.s32 1, %v1767
        %v1769 = vrot.slane %v1760, %v1768
        %v1770 = vlaneseq
        %v1771 = vshrl.u32 %v1770, 7
        %v1772 = vsub.s32 2, %v1771
        %v1773 = vrot.slane %v1760, %v1772
        %v1774 = vlaneseq
        %v1775 = vshrl.u32 %v1774, 7
        %v1776 = vsub.s32 3, %v1775
        %v1777 = vrot.slane %v1760, %v1776
        %v1814 = vunpack.c.l.b16 %v1728
        %v1815 = vunpack.c.h.b16 %v1728
        %v1816 = vunpack.c.l.b16 %v1729
        %v1817 = vunpack.c.h.b16 %v1729
        %v1818 = vunpack.c.l.b16 %v1730
        %v1819 = vunpack.c.h.b16 %v1730
        %v1820 = vunpack.c.l.b16 %v1731
        %v1821 = vunpack.c.h.b16 %v1731
        %v1822 = vunpack.c.l.b16 %v1732
        %v1823 = vunpack.c.h.b16 %v1732
        %v1824 = vunpack.c.l.b16 %v1733
        %v1825 = vunpack.c.h.b16 %v1733
        %v1826 = vunpack.c.l.b16 %v1734
        %v1827 = vunpack.c.h.b16 %v1734
        %v1828 = vunpack.c.l.b16 %v1735
        %v1829 = vunpack.c.h.b16 %v1735
        %v1830 = vunpack.c.l.b16 %v1736
        %v1831 = vunpack.c.h.b16 %v1736
        %v1832 = vunpack.c.l.b16 %v1737
        %v1833 = vunpack.c.h.b16 %v1737
        %v1834 = vunpack.c.l.b16 %v1738
        %v1835 = vunpack.c.h.b16 %v1738
        %v1836 = vunpack.c.l.b16 %v1739
        %v1837 = vunpack.c.h.b16 %v1739
        %v1838 = vunpack.c.l.b16 %v1740
        %v1839 = vunpack.c.h.b16 %v1740
        %v1840 = vunpack.c.l.b16 %v1741
        %v1841 = vunpack.c.h.b16 %v1741
        %v1842 = vunpack.c.l.b16 %v1742
        %v1843 = vunpack.c.h.b16 %v1742
        %v1844 = vunpack.c.l.b16 %v1743
        %v1845 = vunpack.c.h.b16 %v1743
        %v1846 = vunpack.c.l.b16 %v1744
        %v1847 = vunpack.c.h.b16 %v1744
        %v1848 = vunpack.c.l.b16 %v1745
        %v1849 = vunpack.c.h.b16 %v1745
        %v1850 = vunpack.c.l.b16 %v1746
        %v1851 = vunpack.c.h.b16 %v1746
        %v1852 = vunpack.c.l.b16 %v1747
        %v1853 = vunpack.c.h.b16 %v1747
        %v1854 = vunpack.c.l.b16 %v1748
        %v1855 = vunpack.c.h.b16 %v1748
        %v1856 = vunpack.c.l.b16 %v1749
        %v1857 = vunpack.c.h.b16 %v1749
        %v1858 = vunpack.c.l.b16 %v1750
        %v1859 = vunpack.c.h.b16 %v1750
        %v1860 = vunpack.c.l.b16 %v1751
        %v1861 = vunpack.c.h.b16 %v1751
        %v1862 = vunpack.c.l.b16 %v1752
        %v1863 = vunpack.c.h.b16 %v1752
        %v1864 = vunpack.c.l.b16 %v1753
        %v1865 = vunpack.c.h.b16 %v1753
        %v1866 = vunpack.c.l.b16 %v1754
        %v1867 = vunpack.c.h.b16 %v1754
        %v1868 = vunpack.c.l.b16 %v1755
        %v1869 = vunpack.c.h.b16 %v1755
        %v1870 = vunpack.c.l.b16 %v1756
        %v1871 = vunpack.c.h.b16 %v1756
        %v1872 = vunpack.c.l.b16 %v1757
        %v1873 = vunpack.c.h.b16 %v1757
        %v1874 = vunpack.c.l.b16 %v1758
        %v1875 = vunpack.c.h.b16 %v1758
        %v1876 = vunpack.c.l.b16 %v1759
        %v1877 = vunpack.c.h.b16 %v1759
        %v1878 = vpack.c.b16 %v1818, %v1814
        %v1879 = vpack.c.b16 %v1819, %v1815
        %v1880 = vpack.c.b16 %v1820, %v1816
        %v1881 = vpack.c.b16 %v1821, %v1817
        %v1882 = vpack.c.b16 %v1826, %v1822
        %v1883 = vpack.c.b16 %v1827, %v1823
        %v1884 = vpack.c.b16 %v1828, %v1824
        %v1885 = vpack.c.b16 %v1829, %v1825
        %v1886 = vpack.c.b16 %v1834, %v1830
        %v1887 = vpack.c.b16 %v1835, %v1831
        %v1888 = vpack.c.b16 %v1836, %v1832
        %v1889 = vpack.c.b16 %v1837, %v1833
        %v1890 = vpack.c.b16 %v1842, %v1838
        %v1891 = vpack.c.b16 %v1843, %v1839
        %v1892 = vpack.c.b16 %v1844, %v1840
        %v1893 = vpack.c.b16 %v1845, %v1841
        %v1894 = vpack.c.b16 %v1850, %v1846
        %v1895 = vpack.c.b16 %v1851, %v1847
        %v1896 = vpack.c.b16 %v1852, %v1848
        %v1897 = vpack.c.b16 %v1853, %v1849
        %v1898 = vpack.c.b16 %v1858, %v1854
        %v1899 = vpack.c.b16 %v1859, %v1855
        %v1900 = vpack.c.b16 %v1860, %v1856
        %v1901 = vpack.c.b16 %v1861, %v1857
        %v1902 = vpack.c.b16 %v1866, %v1862
        %v1903 = vpack.c.b16 %v1867, %v1863
        %v1904 = vpack.c.b16 %v1868, %v1864
        %v1905 = vpack.c.b16 %v1869, %v1865
        %v1906 = vpack.c.b16 %v1874, %v1870
        %v1907 = vpack.c.b16 %v1875, %v1871
        %v1908 = vpack.c.b16 %v1876, %v1872
        %v1909 = vpack.c.b16 %v1877, %v1873
        %1942 = vmatprep.subr.bf16.mxu0 %v1879
        %1943 = vmatpush1.bf16.msra.mxu0 %v1878
        %1944 = vmatprep.subr.bf16.mxu0 %v1883
        %1945 = vmatpush1.bf16.msra.mxu0 %v1882
        %1946 = vmatprep.subr.bf16.mxu0 %v1887
        %1947 = vmatpush1.bf16.msra.mxu0 %v1886
        %1948 = vmatprep.subr.bf16.mxu0 %v1891
        %1949 = vmatpush1.bf16.msra.mxu0 %v1890
        %1950 = vmatprep.subr.bf16.mxu0 %v1895
        %1951 = vmatpush1.bf16.msra.mxu0 %v1894
        %1952 = vmatprep.subr.bf16.mxu0 %v1899
        %1953 = vmatpush1.bf16.msra.mxu0 %v1898
        %1954 = vmatprep.subr.bf16.mxu0 %v1903
        %1955 = vmatpush1.bf16.msra.mxu0 %v1902
        %1956 = vmatprep.subr.bf16.mxu0 %v1907
        %1957 = vmatpush1.bf16.msra.mxu0 %v1906
        %1958 = vmatprep.subr.bf16.mxu0 0
        %1959 = vmatpush1.bf16.msra.mxu0 0
        %1960 = vmatprep.subr.bf16.mxu0 0
        %1961 = vmatpush1.bf16.msra.mxu0 0
        %1962 = vmatprep.subr.bf16.mxu0 0
        %1963 = vmatpush1.bf16.msra.mxu0 0
        %1964 = vmatprep.subr.bf16.mxu0 0
        %1965 = vmatpush1.bf16.msra.mxu0 0
        %1966 = vmatprep.subr.bf16.mxu0 0
        %1967 = vmatpush1.bf16.msra.mxu0 0
        %1968 = vmatprep.subr.bf16.mxu0 0
        %1969 = vmatpush1.bf16.msra.mxu0 0
        %1970 = vmatprep.subr.bf16.mxu0 0
        %1971 = vmatpush1.bf16.msra.mxu0 0
        %1972 = vmatprep.subr.bf16.mxu0 0
        %1973 = vmatpush1.bf16.msra.mxu0 0
        %1974 = vmatprep.mubr.bf16.mxu0 0
        %1975 = vmatmul.mubr.bf16.gmra.mrb[0].mxu0 %v1727
        %v1976 = vpop.f32.mrb[0].mxu0
        %v1977 = vadd.f32 %v1765, %v1976
        %v1978 = vpop.f32.mrb[0].mxu0
        %v1979 = vadd.f32 %v1769, %v1978
        %v1980 = vpop.f32.mrb[0].mxu0
        %v1981 = vadd.f32 %v1765, %v1980
        %v1982 = vpop.f32.mrb[0].mxu0
        %v1983 = vadd.f32 %v1769, %v1982
        %1984 = vdwg.mxu0
        %1985 = vmatprep.subr.bf16.mxu0 %v1881
        %1986 = vmatpush1.bf16.msra.mxu0 %v1880
        %1987 = vmatprep.subr.bf16.mxu0 %v1885
        %1988 = vmatpush1.bf16.msra.mxu0 %v1884
        %1989 = vmatprep.subr.bf16.mxu0 %v1889
        %1990 = vmatpush1.bf16.msra.mxu0 %v1888
        %1991 = vmatprep.subr.bf16.mxu0 %v1893
        %1992 = vmatpush1.bf16.msra.mxu0 %v1892
        %1993 = vmatprep.subr.bf16.mxu0 %v1897
        %1994 = vmatpush1.bf16.msra.mxu0 %v1896
        %1995 = vmatprep.subr.bf16.mxu0 %v1901
        %1996 = vmatpush1.bf16.msra.mxu0 %v1900
        %1997 = vmatprep.subr.bf16.mxu0 %v1905
        %1998 = vmatpush1.bf16.msra.mxu0 %v1904
        %1999 = vmatprep.subr.bf16.mxu0 %v1909
        %2000 = vmatpush1.bf16.msra.mxu0 %v1908
        %2001 = vmatprep.subr.bf16.mxu0 0
        %2002 = vmatpush1.bf16.msra.mxu0 0
        %2003 = vmatprep.subr.bf16.mxu0 0
        %2004 = vmatpush1.bf16.msra.mxu0 0
        %2005 = vmatprep.subr.bf16.mxu0 0
        %2006 = vmatpush1.bf16.msra.mxu0 0
        %2007 = vmatprep.subr.bf16.mxu0 0
        %2008 = vmatpush1.bf16.msra.mxu0 0
        %2009 = vmatprep.subr.bf16.mxu0 0
        %2010 = vmatpush1.bf16.msra.mxu0 0
        %2011 = vmatprep.subr.bf16.mxu0 0
        %2012 = vmatpush1.bf16.msra.mxu0 0
        %2013 = vmatprep.subr.bf16.mxu0 0
        %2014 = vmatpush1.bf16.msra.mxu0 0
        %2015 = vmatprep.subr.bf16.mxu0 0
        %2016 = vmatpush1.bf16.msra.mxu0 0
        %2017 = vmatprep.mubr.bf16.mxu0 0
        %2018 = vmatmul.mubr.bf16.gmra.mrb[0].mxu0 %v1727
        %v2019 = vpop.f32.mrb[0].mxu0
        %v2020 = vadd.f32 %v1773, %v2019
        %v2021 = vpop.f32.mrb[0].mxu0
        %v2022 = vadd.f32 %v1777, %v2021
        %v2023 = vpop.f32.mrb[0].mxu0
        %v2024 = vadd.f32 %v1773, %v2023
        %v2025 = vpop.f32.mrb[0].mxu0
        %v2026 = vadd.f32 %v1777, %v2025
        %2027 = vdwg.mxu0
        %v2028 = vmul.f32 %v1977, 1.702
        %v2029 = vmul.f32 %v1979, 1.702
        %v2030 = vmul.f32 %v2020, 1.702
        %v2031 = vmul.f32 %v2022, 1.702
        %v2032 = vmul.f32 %v1981, 1.702
        %v2033 = vmul.f32 %v1983, 1.702
        %v2034 = vmul.f32 %v2024, 1.702
        %v2035 = vmul.f32 %v2026, 1.702
        %v2036 = vxor.u32 %v2028, 2147483648
        %v2037 = vxor.u32 %v2029, 2147483648
        %v2038 = vxor.u32 %v2030, 2147483648
        %v2039 = vxor.u32 %v2031, 2147483648
        %v2040 = vxor.u32 %v2032, 2147483648
        %v2041 = vxor.u32 %v2033, 2147483648
        %v2042 = vxor.u32 %v2034, 2147483648
        %v2043 = vxor.u32 %v2035, 2147483648
        %v2044 = vmul.f32 %v2036, 1.442695
        %v2045 = vpow.pop %v2044
        %v2046 = vmul.f32 %v2037, 1.442695
        %v2047 = vpow.pop %v2046
        %v2048 = vmul.f32 %v2038, 1.442695
        %v2049 = vpow.pop %v2048
        %v2050 = vmul.f32 %v2039, 1.442695
        %v2051 = vpow.pop %v2050
        %v2052 = vmul.f32 %v2040, 1.442695
        %v2053 = vpow.pop %v2052
        %v2054 = vmul.f32 %v2041, 1.442695
        %v2055 = vpow.pop %v2054
        %v2056 = vmul.f32 %v2042, 1.442695
        %v2057 = vpow.pop %v2056
        %v2058 = vmul.f32 %v2043, 1.442695
        %v2059 = vpow.pop %v2058
        %v2060 = vadd.f32 %v2045, 1.0
        %v2061 = vadd.f32 %v2047, 1.0
        %v2062 = vadd.f32 %v2049, 1.0
        %v2063 = vadd.f32 %v2051, 1.0
        %v2064 = vadd.f32 %v2053, 1.0
        %v2065 = vadd.f32 %v2055, 1.0
        %v2066 = vadd.f32 %v2057, 1.0
        %v2067 = vadd.f32 %v2059, 1.0
        %v2068 = vrcp.pop %v2060
        %v2069 = vmul.f32 1.0, %v2068
        %v2070 = vrcp.pop %v2061
        %v2071 = vmul.f32 1.0, %v2070
        %v2072 = vrcp.pop %v2062
        %v2073 = vmul.f32 1.0, %v2072
        %v2074 = vrcp.pop %v2063
        %v2075 = vmul.f32 1.0, %v2074
        %v2076 = vrcp.pop %v2064
        %v2077 = vmul.f32 1.0, %v2076
        %v2078 = vrcp.pop %v2065
        %v2079 = vmul.f32 1.0, %v2078
        %v2080 = vrcp.pop %v2066
        %v2081 = vmul.f32 1.0, %v2080
        %v2082 = vrcp.pop %v2067
        %v2083 = vmul.f32 1.0, %v2082
        %v2084 = vmul.f32 %v1977, %v2069
        %v2085 = vmul.f32 %v1979, %v2071
        %v2086 = vmul.f32 %v2020, %v2073
        %v2087 = vmul.f32 %v2022, %v2075
        %v2088 = vmul.f32 %v1981, %v2077
        %v2089 = vmul.f32 %v1983, %v2079
        %v2090 = vmul.f32 %v2024, %v2081
        %v2091 = vmul.f32 %v2026, %v2083
        %v2092 = vpack.c.bf16 %v2088, %v2084
        %v2093 = vpack.c.bf16 %v2089, %v2085
        %v2094 = vpack.c.bf16 %v2090, %v2086
        %v2095 = vpack.c.bf16 %v2091, %v2087
        %v2096 = vld [vmem:[%s688] sm:$0xf]
        %v2097 = vld [vmem:[%s688 + $0x4] sm:$0xf]
        %v2098 = vld [vmem:[%s688 + $0x8] sm:$0xf]
        %v2099 = vld [vmem:[%s688 + $0xc] sm:$0xf]
        %v2100 = vld [vmem:[%s688 + $0x10] sm:$0xf]
        %v2101 = vld [vmem:[%s688 + $0x14] sm:$0xf]
        %v2102 = vld [vmem:[%s688 + $0x18] sm:$0xf]
        %v2103 = vld [vmem:[%s688 + $0x1c] sm:$0xf]
        %v2104 = vld [vmem:[%s688 + $0x20] sm:$0xf]
        %v2105 = vld [vmem:[%s688 + $0x24] sm:$0xf]
        %v2106 = vld [vmem:[%s688 + $0x28] sm:$0xf]
        %v2107 = vld [vmem:[%s688 + $0x2c] sm:$0xf]
        %v2108 = vld [vmem:[%s688 + $0x30] sm:$0xf]
        %v2109 = vld [vmem:[%s688 + $0x34] sm:$0xf]
        %v2110 = vld [vmem:[%s688 + $0x38] sm:$0xf]
        %v2111 = vld [vmem:[%s688 + $0x3c] sm:$0xf]
        %v2112 = vld [vmem:[%s688 + $0x40] sm:$0xf]
        %v2113 = vld [vmem:[%s688 + $0x44] sm:$0xf]
        %v2114 = vld [vmem:[%s688 + $0x48] sm:$0xf]
        %v2115 = vld [vmem:[%s688 + $0x4c] sm:$0xf]
        %v2116 = vld [vmem:[%s688 + $0x50] sm:$0xf]
        %v2117 = vld [vmem:[%s688 + $0x54] sm:$0xf]
        %v2118 = vld [vmem:[%s688 + $0x58] sm:$0xf]
        %v2119 = vld [vmem:[%s688 + $0x5c] sm:$0xf]
        %v2120 = vld [vmem:[%s688 + $0x60] sm:$0xf]
        %v2121 = vld [vmem:[%s688 + $0x64] sm:$0xf]
        %v2122 = vld [vmem:[%s688 + $0x68] sm:$0xf]
        %v2123 = vld [vmem:[%s688 + $0x6c] sm:$0xf]
        %v2124 = vld [vmem:[%s688 + $0x70] sm:$0xf]
        %v2125 = vld [vmem:[%s688 + $0x74] sm:$0xf]
        %v2126 = vld [vmem:[%s688 + $0x78] sm:$0xf]
        %v2127 = vld [vmem:[%s688 + $0x7c] sm:$0xf]
        %v2128 = vld [vmem:[%s688 + $0x80] sm:$0xf]
        %v2129 = vld [vmem:[%s688 + $0x84] sm:$0xf]
        %v2130 = vld [vmem:[%s688 + $0x88] sm:$0xf]
        %v2131 = vld [vmem:[%s688 + $0x8c] sm:$0xf]
        %v2132 = vld [vmem:[%s688 + $0x90] sm:$0xf]
        %v2133 = vld [vmem:[%s688 + $0x94] sm:$0xf]
        %v2134 = vld [vmem:[%s688 + $0x98] sm:$0xf]
        %v2135 = vld [vmem:[%s688 + $0x9c] sm:$0xf]
        %v2136 = vld [vmem:[%s688 + $0xa0] sm:$0xf]
        %v2137 = vld [vmem:[%s688 + $0xa4] sm:$0xf]
        %v2138 = vld [vmem:[%s688 + $0xa8] sm:$0xf]
        %v2139 = vld [vmem:[%s688 + $0xac] sm:$0xf]
        %v2140 = vld [vmem:[%s688 + $0xb0] sm:$0xf]
        %v2141 = vld [vmem:[%s688 + $0xb4] sm:$0xf]
        %v2142 = vld [vmem:[%s688 + $0xb8] sm:$0xf]
        %v2143 = vld [vmem:[%s688 + $0xbc] sm:$0xf]
        %v2144 = vld [vmem:[%s688 + $0xc0] sm:$0xf]
        %v2145 = vld [vmem:[%s688 + $0xc4] sm:$0xf]
        %v2146 = vld [vmem:[%s688 + $0xc8] sm:$0xf]
        %v2147 = vld [vmem:[%s688 + $0xcc] sm:$0xf]
        %v2148 = vld [vmem:[%s688 + $0xd0] sm:$0xf]
        %v2149 = vld [vmem:[%s688 + $0xd4] sm:$0xf]
        %v2150 = vld [vmem:[%s688 + $0xd8] sm:$0xf]
        %v2151 = vld [vmem:[%s688 + $0xdc] sm:$0xf]
        %v2152 = vld [vmem:[%s688 + $0xe0] sm:$0xf]
        %v2153 = vld [vmem:[%s688 + $0xe4] sm:$0xf]
        %v2154 = vld [vmem:[%s688 + $0xe8] sm:$0xf]
        %v2155 = vld [vmem:[%s688 + $0xec] sm:$0xf]
        %v2156 = vld [vmem:[%s688 + $0xf0] sm:$0xf]
        %v2157 = vld [vmem:[%s688 + $0xf4] sm:$0xf]
        %v2158 = vld [vmem:[%s688 + $0xf8] sm:$0xf]
        %v2159 = vld [vmem:[%s688 + $0xfc] sm:$0xf]
        %v2160 = vld [vmem:[%s796] sm:$0x1]
        %v2162 = vlaneseq
        %v2163 = vshrl.u32 %v2162, 7
        %v2164 = vsub.s32 0, %v2163
        %v2165 = vrot.slane %v2160, %v2164
        %v2231 = vunpack.c.l.b16 %v2096
        %v2232 = vunpack.c.l.b16 %v2097
        %v2233 = vunpack.c.l.b16 %v2098
        %v2234 = vunpack.c.l.b16 %v2099
        %v2235 = vunpack.c.l.b16 %v2100
        %v2236 = vunpack.c.l.b16 %v2101
        %v2237 = vunpack.c.l.b16 %v2102
        %v2238 = vunpack.c.l.b16 %v2103
        %v2239 = vunpack.c.l.b16 %v2104
        %v2240 = vunpack.c.l.b16 %v2105
        %v2241 = vunpack.c.l.b16 %v2106
        %v2242 = vunpack.c.l.b16 %v2107
        %v2243 = vunpack.c.l.b16 %v2108
        %v2244 = vunpack.c.l.b16 %v2109
        %v2245 = vunpack.c.l.b16 %v2110
        %v2246 = vunpack.c.l.b16 %v2111
        %v2247 = vunpack.c.l.b16 %v2112
        %v2248 = vunpack.c.l.b16 %v2113
        %v2249 = vunpack.c.l.b16 %v2114
        %v2250 = vunpack.c.l.b16 %v2115
        %v2251 = vunpack.c.l.b16 %v2116
        %v2252 = vunpack.c.l.b16 %v2117
        %v2253 = vunpack.c.l.b16 %v2118
        %v2254 = vunpack.c.l.b16 %v2119
        %v2255 = vunpack.c.l.b16 %v2120
        %v2256 = vunpack.c.l.b16 %v2121
        %v2257 = vunpack.c.l.b16 %v2122
        %v2258 = vunpack.c.l.b16 %v2123
        %v2259 = vunpack.c.l.b16 %v2124
        %v2260 = vunpack.c.l.b16 %v2125
        %v2261 = vunpack.c.l.b16 %v2126
        %v2262 = vunpack.c.l.b16 %v2127
        %v2263 = vunpack.c.l.b16 %v2128
        %v2264 = vunpack.c.l.b16 %v2129
        %v2265 = vunpack.c.l.b16 %v2130
        %v2266 = vunpack.c.l.b16 %v2131
        %v2267 = vunpack.c.l.b16 %v2132
        %v2268 = vunpack.c.l.b16 %v2133
        %v2269 = vunpack.c.l.b16 %v2134
        %v2270 = vunpack.c.l.b16 %v2135
        %v2271 = vunpack.c.l.b16 %v2136
        %v2272 = vunpack.c.l.b16 %v2137
        %v2273 = vunpack.c.l.b16 %v2138
        %v2274 = vunpack.c.l.b16 %v2139
        %v2275 = vunpack.c.l.b16 %v2140
        %v2276 = vunpack.c.l.b16 %v2141
        %v2277 = vunpack.c.l.b16 %v2142
        %v2278 = vunpack.c.l.b16 %v2143
        %v2279 = vunpack.c.l.b16 %v2144
        %v2280 = vunpack.c.l.b16 %v2145
        %v2281 = vunpack.c.l.b16 %v2146
        %v2282 = vunpack.c.l.b16 %v2147
        %v2283 = vunpack.c.l.b16 %v2148
        %v2284 = vunpack.c.l.b16 %v2149
        %v2285 = vunpack.c.l.b16 %v2150
        %v2286 = vunpack.c.l.b16 %v2151
        %v2287 = vunpack.c.l.b16 %v2152
        %v2288 = vunpack.c.l.b16 %v2153
        %v2289 = vunpack.c.l.b16 %v2154
        %v2290 = vunpack.c.l.b16 %v2155
        %v2291 = vunpack.c.l.b16 %v2156
        %v2292 = vunpack.c.l.b16 %v2157
        %v2293 = vunpack.c.l.b16 %v2158
        %v2294 = vunpack.c.l.b16 %v2159
        %v2295 = vpack.c.b16 %v2232, %v2231
        %v2296 = vpack.c.b16 %v2234, %v2233
        %v2297 = vpack.c.b16 %v2236, %v2235
        %v2298 = vpack.c.b16 %v2238, %v2237
        %v2299 = vpack.c.b16 %v2240, %v2239
        %v2300 = vpack.c.b16 %v2242, %v2241
        %v2301 = vpack.c.b16 %v2244, %v2243
        %v2302 = vpack.c.b16 %v2246, %v2245
        %v2303 = vpack.c.b16 %v2248, %v2247
        %v2304 = vpack.c.b16 %v2250, %v2249
        %v2305 = vpack.c.b16 %v2252, %v2251
        %v2306 = vpack.c.b16 %v2254, %v2253
        %v2307 = vpack.c.b16 %v2256, %v2255
        %v2308 = vpack.c.b16 %v2258, %v2257
        %v2309 = vpack.c.b16 %v2260, %v2259
        %v2310 = vpack.c.b16 %v2262, %v2261
        %v2311 = vpack.c.b16 %v2264, %v2263
        %v2312 = vpack.c.b16 %v2266, %v2265
        %v2313 = vpack.c.b16 %v2268, %v2267
        %v2314 = vpack.c.b16 %v2270, %v2269
        %v2315 = vpack.c.b16 %v2272, %v2271
        %v2316 = vpack.c.b16 %v2274, %v2273
        %v2317 = vpack.c.b16 %v2276, %v2275
        %v2318 = vpack.c.b16 %v2278, %v2277
        %v2319 = vpack.c.b16 %v2280, %v2279
        %v2320 = vpack.c.b16 %v2282, %v2281
        %v2321 = vpack.c.b16 %v2284, %v2283
        %v2322 = vpack.c.b16 %v2286, %v2285
        %v2323 = vpack.c.b16 %v2288, %v2287
        %v2324 = vpack.c.b16 %v2290, %v2289
        %v2325 = vpack.c.b16 %v2292, %v2291
        %v2326 = vpack.c.b16 %v2294, %v2293
        %2359 = vmatprep.subr.bf16.mxu0 0
        %2360 = vmatpush1.bf16.msra.mxu0 %v2295
        %2361 = vmatprep.subr.bf16.mxu0 0
        %2362 = vmatpush1.bf16.msra.mxu0 %v2296
        %2363 = vmatprep.subr.bf16.mxu0 0
        %2364 = vmatpush1.bf16.msra.mxu0 %v2297
        %2365 = vmatprep.subr.bf16.mxu0 0
        %2366 = vmatpush1.bf16.msra.mxu0 %v2298
        %2367 = vmatprep.subr.bf16.mxu0 0
        %2368 = vmatpush1.bf16.msra.mxu0 %v2299
        %2369 = vmatprep.subr.bf16.mxu0 0
        %2370 = vmatpush1.bf16.msra.mxu0 %v2300
        %2371 = vmatprep.subr.bf16.mxu0 0
        %2372 = vmatpush1.bf16.msra.mxu0 %v2301
        %2373 = vmatprep.subr.bf16.mxu0 0
        %2374 = vmatpush1.bf16.msra.mxu0 %v2302
        %2375 = vmatprep.subr.bf16.mxu0 0
        %2376 = vmatpush1.bf16.msra.mxu0 %v2303
        %2377 = vmatprep.subr.bf16.mxu0 0
        %2378 = vmatpush1.bf16.msra.mxu0 %v2304
        %2379 = vmatprep.subr.bf16.mxu0 0
        %2380 = vmatpush1.bf16.msra.mxu0 %v2305
        %2381 = vmatprep.subr.bf16.mxu0 0
        %2382 = vmatpush1.bf16.msra.mxu0 %v2306
        %2383 = vmatprep.subr.bf16.mxu0 0
        %2384 = vmatpush1.bf16.msra.mxu0 %v2307
        %2385 = vmatprep.subr.bf16.mxu0 0
        %2386 = vmatpush1.bf16.msra.mxu0 %v2308
        %2387 = vmatprep.subr.bf16.mxu0 0
        %2388 = vmatpush1.bf16.msra.mxu0 %v2309
        %2389 = vmatprep.subr.bf16.mxu0 0
        %2390 = vmatpush1.bf16.msra.mxu0 %v2310
        %2391 = vmatprep.mubr.bf16.mxu0 %v2093
        %2392 = vmatmul.mubr.bf16.gmra.mrb[0].mxu0 %v2092
        %v2393 = vpop.f32.mrb[0].mxu0
        %v2394 = vadd.f32 %v2165, %v2393
        %v2395 = vpop.f32.mrb[0].mxu0
        %v2396 = vpop.f32.mrb[0].mxu0
        %v2397 = vadd.f32 %v2165, %v2396
        %v2398 = vpop.f32.mrb[0].mxu0
        %2399 = vdwg.mxu0
        %2400 = vmatprep.subr.bf16.mxu0 0
        %2401 = vmatpush1.bf16.msra.mxu0 %v2311
        %2402 = vmatprep.subr.bf16.mxu0 0
        %2403 = vmatpush1.bf16.msra.mxu0 %v2312
        %2404 = vmatprep.subr.bf16.mxu0 0
        %2405 = vmatpush1.bf16.msra.mxu0 %v2313
        %2406 = vmatprep.subr.bf16.mxu0 0
        %2407 = vmatpush1.bf16.msra.mxu0 %v2314
        %2408 = vmatprep.subr.bf16.mxu0 0
        %2409 = vmatpush1.bf16.msra.mxu0 %v2315
        %2410 = vmatprep.subr.bf16.mxu0 0
        %2411 = vmatpush1.bf16.msra.mxu0 %v2316
        %2412 = vmatprep.subr.bf16.mxu0 0
        %2413 = vmatpush1.bf16.msra.mxu0 %v2317
        %2414 = vmatprep.subr.bf16.mxu0 0
        %2415 = vmatpush1.bf16.msra.mxu0 %v2318
        %2416 = vmatprep.subr.bf16.mxu0 0
        %2417 = vmatpush1.bf16.msra.mxu0 %v2319
        %2418 = vmatprep.subr.bf16.mxu0 0
        %2419 = vmatpush1.bf16.msra.mxu0 %v2320
        %2420 = vmatprep.subr.bf16.mxu0 0
        %2421 = vmatpush1.bf16.msra.mxu0 %v2321
        %2422 = vmatprep.subr.bf16.mxu0 0
        %2423 = vmatpush1.bf16.msra.mxu0 %v2322
        %2424 = vmatprep.subr.bf16.mxu0 0
        %2425 = vmatpush1.bf16.msra.mxu0 %v2323
        %2426 = vmatprep.subr.bf16.mxu0 0
        %2427 = vmatpush1.bf16.msra.mxu0 %v2324
        %2428 = vmatprep.subr.bf16.mxu0 0
        %2429 = vmatpush1.bf16.msra.mxu0 %v2325
        %2430 = vmatprep.subr.bf16.mxu0 0
        %2431 = vmatpush1.bf16.msra.mxu0 %v2326
        %2432 = vmatprep.mubr.bf16.mxu0 %v2095
        %2433 = vmatmul.mubr.bf16.gmra.mrb[0].mxu0 %v2094
        %v2434 = vpop.f32.mrb[0].mxu0
        %v2435 = vadd.f32 %v2394, %v2434
        %v2436 = vpop.f32.mrb[0].mxu0
        %v2437 = vpop.f32.mrb[0].mxu0
        %v2438 = vadd.f32 %v2397, %v2437
        %v2439 = vpop.f32.mrb[0].mxu0
        %2440 = vdwg.mxu0
        %v2441 = vadd.f32 %v1685, %v2435
        %v2442 = vadd.f32 %v1686, %v2438
        %2443 = vst [vmem:[#allocation14] sm:$0xff] %v2441
        %2444 = vst [vmem:[#allocation14 + $0x8] sm:$0xff] %v2442
        %v2445 = vmul.f32 %v1460, 0.5
        %v2446 = vmul.f32 %v1461, 0.5
        %2447 = vst.msk [vmem:[%s775] sm:$0xff] %vm1214, %v2445
        %2448 = vst.msk [vmem:[%s775 + $0x8] sm:$0xff] %vm1214, %v2446
        %s2449 = sand.u32 %s426, 1
        %s2450 = scalar_lea.sflag [#allocation16], %s2449
        %s2451 = sand.u32 %s426, 1
        %s2452 = smul.addr %s2451, 16
        %s2453 = scalar_lea.vmem [#allocation15], %s2452
        // Predicated region
        $region105: #{tpu_custom_call.1} parent=71 // pred_check
          %p2454 = pneg %p408
        $region106: #{tpu_custom_call.1} parent=71 // pred_check_branch
          %2456 = sbr.rel (%p2454) target = $region108
        $region107: #{tpu_custom_call.1} parent=71 // pred_region
          %s2457 = smul.u32 2, %s44
          %s2459 = ssub.s32 256, 256
          %2460 = vsyncadd [#allocation4], %s2459
          %s2461 = smul.addr %s2457, 128
          %s2462 = scalar_lea.hbm %s13, %s2461
          %s2463 = sshll.u32 [#allocation14], 4
          %s2464 = int_to_ptr.vmem [resolvable:$true] %s2463
          %2469 = dma.vmem_to_hbm [thread:$0]  %s2464, 256, %s2462, [#allocation4], 128, 128, 8
        $region108: #{tpu_custom_call.1} parent=71 // pred_fallthru
          _
        // Predicated region
        $region109: #{tpu_custom_call.1} parent=71 // pred_check
          %p2470 = pneg %p436
        $region110: #{tpu_custom_call.1} parent=71 // pred_check_branch
          %2472 = sbr.rel (%p2470) target = $region112
        $region111: #{tpu_custom_call.1} parent=71 // pred_region
          %s2473 = smul.u32 2, %s44
          %s2475 = ssub.s32 256, 256
          %2476 = vsyncadd %s2450, %s2475
          %s2477 = smul.addr %s45, 2
          %s2478 = sadd.s32 %s2473, %s2477
          %s2479 = smul.addr %s2478, 128
          %s2480 = scalar_lea.hbm %s14, %s2479
          %s2481 = sshll.u32 %s2453, 4
          %s2482 = int_to_ptr.vmem [resolvable:$true] %s2481
          %2487 = dma.vmem_to_hbm [thread:$0]  %s2482, 256, %s2480, %s2450, 128, 128, 8
        $region112: #{tpu_custom_call.1} parent=71 // pred_fallthru
          _
        // Predicated region
        $region113: #{tpu_custom_call.1} parent=71 // pred_check
          %p2488 = pneg %p408
        $region114: #{tpu_custom_call.1} parent=71 // pred_check_branch
          %2490 = sbr.rel (%p2488) target = $region116
        $region115: #{tpu_custom_call.1} parent=71 // pred_region
          %2491 = dma.done [#allocation4], 256
        $region116: #{tpu_custom_call.1} parent=71 // pred_fallthru
          _
      $region72: #{tpu_custom_call.1} parent=5 // pred_fallthru
        _
      %p2492 = scmp.le.s32.totalorder 2, %s35
      // Predicated region
      $region117: #{tpu_custom_call.1} parent=5 // pred_check
        %p2493 = pneg %p2492
      $region118: #{tpu_custom_call.1} parent=5 // pred_check_branch
        %2495 = sbr.rel (%p2493) target = $region120
      $region119: #{tpu_custom_call.1} parent=5 // pred_region
        %s2496 = ssub.s32 %s35, 2
        // Predicated region
        $region121: #{tpu_custom_call.1} parent=119 // pred_check
          %p2497 = pneg %p442
        $region122: #{tpu_custom_call.1} parent=119 // pred_check_branch
          %2499 = sbr.rel (%p2497) target = $region124
        $region123: #{tpu_custom_call.1} parent=119 // pred_region
          %s2500 = sand.u32 %s427, 1
          %s2501 = scalar_lea.sflag [#allocation16], %s2500
          %s2502 = sand.u32 %s427, 1
          %s2503 = smul.addr %s2502, 16
          %s2504 = scalar_lea.vmem [#allocation15], %s2503
          %2505 = dma.done %s2501, 256
        $region124: #{tpu_custom_call.1} parent=119 // pred_fallthru
          _
      $region120: #{tpu_custom_call.1} parent=5 // pred_fallthru
        _
    $region6: #{tpu_custom_call.1} parent=1 // loop_footer
      %s39 = sadd.s32 1, %s35
    $region7: #{tpu_custom_call.1} parent=1 // loop_footer_branch
      %34 = sbr.rel target = $region3
    $region8: #{tpu_custom_call.1} parent=1 // loop_exit
      _
    %2506 = vsyncpa [#allocation3], 1
    %s2507 = scalar_lea.sflag [#allocation3], 1
    %2508 = vsyncpa %s2507, 1
    %2509 = vsyncpa [#allocation6], 1
    %s2510 = scalar_lea.sflag [#allocation6], 1
    %2511 = vsyncpa %s2510, 1
    %2512 = vsyncpa [#allocation9], 1
    %s2513 = scalar_lea.sflag [#allocation9], 1
    %2514 = vsyncpa %s2513, 1
    %2515 = vsyncpa [#allocation12], 1
    %s2516 = scalar_lea.sflag [#allocation12], 1
    %2517 = vsyncpa %s2516, 1
    %2518 = vsyncpa [#allocation4], 1
    %s2519 = scalar_lea.sflag [#allocation4], 1
    %2520 = vsyncpa %s2519, 1
    %2521 = vsyncpa [#allocation16], 1
    %s2522 = scalar_lea.sflag [#allocation16], 1
    %2523 = vsyncpa %s2522, 1

</llo_original>
